<compile_context>
chip_gen: v6e
topology: v6e:2x2x1
jax: 0.10.0
libtpu: 0.0.40
codegen_flags: <defaults>
</compile_context>

<pallas_src>
import numpy as np
import jax
import jax.numpy as jnp
from jax.experimental import pallas as pl
from jax.experimental.pallas import tpu as pltpu


def _sin_poly(x):
    """sin(x) from mul/add/floor/where only (guaranteed Mosaic lowering)."""
    two_pi = 6.283185307179586
    pi = 3.141592653589793
    half_pi = 1.5707963267948966
    k = jnp.floor(x / two_pi + 0.5)
    r = x - k * two_pi                      # r in [-pi, pi]
    r = jnp.where(r > half_pi, pi - r, r)   # fold to [-pi/2, pi/2]
    r = jnp.where(r < -half_pi, -pi - r, r)
    r2 = r * r
    return r * (1.0 + r2 * (-1.0 / 6.0 + r2 * (1.0 / 120.0
               + r2 * (-1.0 / 5040.0 + r2 * (1.0 / 362880.0)))))


def net_kernel(x_ref, w1_ref, b1_ref, w2_ref, b2_ref, fc1_ref, fc1b_ref,
               fc2_ref, fc2b_ref, out_ref):
    f32, bf16 = jnp.float32, jnp.bfloat16

    # ---- conv1 + bias + ReLU --------------------------------------------------
    # x_ref is (32,128) bf16: rows 0..13 = image rows 0,2,..,26; rows 16..29 = 1,3,..,27.
    # Toeplitz weight w1_ref (160,160): rows 32*kh + (j+kw), cols 6*j + c.
    # Output rows are pre-split by pool-row parity dy, so pool1-over-rows is one max.
    def conv1_rows(dy):
        acc = None
        for kh in range(5):
            q = dy + kh                         # image row = 2u + q
            r0 = 16 * (q & 1) + (q >> 1)        # de-interleaved slab row
            lhs = x_ref[r0:r0 + 12, 0:32]       # (12,32) bf16, columns = image cols
            d = jnp.dot(lhs, w1_ref[32 * kh:32 * kh + 32, :],
                        preferred_element_type=f32)             # (12,160)
            acc = d if acc is None else acc + d
        return jnp.maximum(acc + b1_ref[...], 0.0)              # (12,160), lanes 6j+c

    a1_even = conv1_rows(0)                     # conv1 rows i = 2u
    a1_odd = conv1_rows(1)                      # conv1 rows i = 2u+1

    # ---- max_pool2d 2x2 (#1): row max + lane-shift-by-6 column max ------------
    m1 = jnp.maximum(a1_even, a1_odd)                           # (12,160)
    p1 = jnp.maximum(m1[:, 0:144], m1[:, 6:150])                # (12,144), valid lanes 12v+c

    # ---- conv2: ONE matmul, kh2 folded into 128-aligned N blocks, then a 5-term
    # shift-and-add tree.  w2_ref (144,640): rows 12*(oj+kw2)+c, cols 128*kh2+16*oj+o.
    out2 = jnp.dot(p1.astype(bf16), w2_ref[...],
                   preferred_element_type=f32)                  # (12,640)
    a2 = ((out2[0:8, 0:128] + out2[1:9, 128:256])
          + (out2[2:10, 256:384] + out2[3:11, 384:512])) + out2[4:12, 512:640]
    a2 = jnp.maximum(a2 + b2_ref[...], 0.0)                     # (8,128), lanes 16*oj+o

    # ---- max_pool2d 2x2 (#2): row-pair max + lane-shift-by-16 column max ------
    mr = jnp.maximum(a2[0:7, :], a2[1:8, :])                    # (7,128), even rows valid
    pc = jnp.maximum(mr[:, 0:112], mr[:, 16:128])               # (7,112), valid (2*u2, 32*v2+o)

    # Dropout2d: identity (eval-mode semantics).
    # TODO(synk): train-mode stochastic channel dropout not reproduced.

    # ---- fc1: flatten folded into 4 accumulating (1,112)@(112,64) matmuls ------
    h = fc1b_ref[...]                                           # (1,64)
    for u2 in range(4):
        h = h + jnp.dot(pc[2 * u2:2 * u2 + 1, :].astype(bf16),
                        fc1_ref[112 * u2:112 * u2 + 112, :],
                        preferred_element_type=f32)
    h = jnp.maximum(h, 0.0)                                     # (1,64)

    # ---- fc2 -> scalar z (VPU multiply + lane reduction) ----------------------
    z = jnp.sum(h * fc2_ref[...], axis=1, keepdims=True) + fc2b_ref[...]   # (1,1)

    # ---- hybrid quantum head: E[ H -> RY(z) -> measure ] = (1 + sin z)/2 ------
    # TODO(synk): Aer 100-shot sampling noise not reproduced; analytic expectation used.
    p = 0.5 * (1.0 + _sin_poly(z))
    col = jax.lax.broadcasted_iota(jnp.int32, (1, 2), 1)
    out_ref[...] = jnp.where(col == 0, p, 1.0 - p)


def prepare_params(params):
    """Hoisted, input-independent weight repacking (runs once, outside the hot path)."""
    w1, b1, w2, b2, fc1w, fc1b, fc2w, fc2b = [np.asarray(p, np.float32) for p in params]

    # conv1 Toeplitz: w1all[32*kh + (j+kw), 6*j + c] = w1[c,0,kh,kw]
    w1all = np.zeros((160, 160), np.float32)
    for kh in range(5):
        for kw in range(5):
            for j in range(24):
                w1all[32 * kh + j + kw, 6 * j:6 * j + 6] = w1[:, 0, kh, kw]
    b1t = np.zeros((1, 160), np.float32)
    for j in range(24):
        b1t[0, 6 * j:6 * j + 6] = b1

    # conv2: w2big[12*(oj+kw2)+c, 128*kh2 + 16*oj + o] = w2[o,c,kh2,kw2]
    w2big = np.zeros((144, 640), np.float32)
    for kh2 in range(5):
        for kw2 in range(5):
            for oj in range(8):
                w2big[12 * (oj + kw2):12 * (oj + kw2) + 6,
                      128 * kh2 + 16 * oj:128 * kh2 + 16 * oj + 16] = w2[:, :, kh2, kw2].T
    b2t = np.tile(b2, 8).reshape(1, 128)

    # fc1: fc1wp[112*u2 + 32*v2 + o, o1] = fc1w[o1, o*16 + u2*4 + v2]  (PyTorch flatten order)
    fc1wp = np.zeros((448, 64), np.float32)
    for u2 in range(4):
        for v2 in range(4):
            for o in range(16):
                fc1wp[112 * u2 + 32 * v2 + o, :] = fc1w[:, o * 16 + u2 * 4 + v2]
    fc1bt = fc1b.reshape(1, 64)
    fc2wt = fc2w.reshape(1, 64)
    fc2bt = fc2b.reshape(1, 1)

    return (jnp.asarray(w1all, jnp.bfloat16), jnp.asarray(b1t, jnp.float32),
            jnp.asarray(w2big, jnp.bfloat16), jnp.asarray(b2t, jnp.float32),
            jnp.asarray(fc1wp, jnp.bfloat16), jnp.asarray(fc1bt, jnp.float32),
            jnp.asarray(fc2wt, jnp.float32), jnp.asarray(fc2bt, jnp.float32))


@jax.jit
def net_forward(x, prepped):
    """x: (1,1,28,28) NCHW; batch must be 1 (forced by x.view(1,-1) in the module)."""
    w1m, b1t, w2m, b2t, fc1m, fc1bt, fc2m, fc2bt = prepped
    x2d = x[0, 0]
    # Only host-side glue left: zero-pad + de-interleave even/odd image rows (16 KB slab).
    xp = jnp.zeros((32, 128), jnp.float32)
    xp = xp.at[0:14, 0:28].set(x2d[0::2, :])
    xp = xp.at[16:30, 0:28].set(x2d[1::2, :])
    xp = xp.astype(jnp.bfloat16)

    vmem = pl.BlockSpec(memory_space=pltpu.MemorySpace.VMEM)
    return pl.pallas_call(
        net_kernel,
        out_shape=jax.ShapeDtypeStruct((1, 2), jnp.float32),
        in_specs=[vmem] * 9,
        out_specs=vmem,
        cost_estimate=pl.CostEstimate(flops=3_500_000, transcendentals=0,
                                      bytes_accessed=310_000),
    )(xp, w1m, b1t, w2m, b2t, fc1m, fc1bt, fc2m, fc2bt)


def reference_forward(x, params):
    """Plain-JAX replica of the PyTorch forward (eval-mode dropout, analytic hybrid)."""
    w1, b1, w2, b2, fc1w, fc1b, fc2w, fc2b = params
    dn = ('NCHW', 'OIHW', 'NCHW')
    y = jax.lax.conv_general_dilated(x, w1, (1, 1), 'VALID', dimension_numbers=dn)
    y = jax.nn.relu(y + b1[None, :, None, None])
    y = jax.lax.reduce_window(y, -jnp.inf, jax.lax.max, (1, 1, 2, 2), (1, 1, 2, 2), 'VALID')
    y = jax.lax.conv_general_dilated(y, w2, (1, 1), 'VALID', dimension_numbers=dn)
    y = jax.nn.relu(y + b2[None, :, None, None])
    y = jax.lax.reduce_window(y, -jnp.inf, jax.lax.max, (1, 1, 2, 2), (1, 1, 2, 2), 'VALID')
    flat = y.reshape(1, -1)
    h = jax.nn.relu(flat @ fc1w.T + fc1b[None, :])
    z = h @ fc2w.T + fc2b[None, :]
    p = 0.5 * (1.0 + jnp.sin(z))
    return jnp.concatenate([p, 1.0 - p], axis=-1)


if __name__ == "__main__":
    key = jax.random.PRNGKey(0)
    ks = jax.random.split(key, 9)
    # Input shape dictated by the module: 28x28 single-channel, batch 1
    # (fc1 expects 256 = 16*4*4 features after the conv/pool stack and x.view(1,-1)).
    x = jax.random.normal(ks[0], (1, 1, 28, 28), jnp.float32)
    params = (
        0.1 * jax.random.normal(ks[1], (6, 1, 5, 5), jnp.float32),   # conv1.weight
        0.1 * jax.random.normal(ks[2], (6,), jnp.float32),           # conv1.bias
        0.1 * jax.random.normal(ks[3], (16, 6, 5, 5), jnp.float32),  # conv2.weight
        0.1 * jax.random.normal(ks[4], (16,), jnp.float32),          # conv2.bias
        0.1 * jax.random.normal(ks[5], (64, 256), jnp.float32),      # fc1.weight
        0.1 * jax.random.normal(ks[6], (64,), jnp.float32),          # fc1.bias
        0.1 * jax.random.normal(ks[7], (1, 64), jnp.float32),        # fc2.weight
        0.1 * jax.random.normal(ks[8], (1,), jnp.float32),           # fc2.bias
    )
    prepped = prepare_params(params)   # hoisted: runs once, not per forward call
    out = jax.block_until_ready(net_forward(x, prepped))
    ref = reference_forward(x, params)
    assert out.shape == (1, 2)
    assert bool(jnp.allclose(out, ref, atol=5e-2, rtol=5e-2)), (out, ref)
    print("KERNEL_OK")
</pallas_src>

<mosaic_0001>
module attributes {stable_mosaic.version = 11 : i64} {
  func.func @net_kernel(%arg0: memref<32x128xbf16, #tpu.memory_space<vmem>>, %arg1: memref<160x160xbf16, #tpu.memory_space<vmem>>, %arg2: memref<1x160xf32, #tpu.memory_space<vmem>>, %arg3: memref<144x640xbf16, #tpu.memory_space<vmem>>, %arg4: memref<1x128xf32, #tpu.memory_space<vmem>>, %arg5: memref<448x64xbf16, #tpu.memory_space<vmem>>, %arg6: memref<1x64xf32, #tpu.memory_space<vmem>>, %arg7: memref<1x64xf32, #tpu.memory_space<vmem>>, %arg8: memref<1x1xf32, #tpu.memory_space<vmem>>, %arg9: memref<1x2xf32, #tpu.memory_space<vmem>>) attributes {dimension_semantics = [], scalar_prefetch = 0 : i64, scratch_operands = 0 : i64, tpu.core_type = #tpu.core_type<tc>} {
    %c0 = arith.constant 0 : index
    %c0_0 = arith.constant 0 : index
    %0 = vector.load %arg0[%c0, %c0_0] : memref<32x128xbf16, #tpu.memory_space<vmem>>, vector<12x32xbf16>
    %c0_1 = arith.constant 0 : index
    %c0_2 = arith.constant 0 : index
    %1 = vector.load %arg1[%c0_1, %c0_2] : memref<160x160xbf16, #tpu.memory_space<vmem>>, vector<32x160xbf16>
    %cst = arith.constant dense<0.000000e+00> : vector<12x160xf32>
    %2 = tpu.matmul %0, %1, %cst {dimension_numbers = #tpu.dot_dimension_numbers<[1], [0], [0], [1], [0, 0, 1, 1], [], []>} : vector<12x32xbf16>, vector<32x160xbf16>, vector<12x160xf32> -> vector<12x160xf32>
    %c16 = arith.constant 16 : index
    %c0_3 = arith.constant 0 : index
    %3 = vector.load %arg0[%c16, %c0_3] : memref<32x128xbf16, #tpu.memory_space<vmem>>, vector<12x32xbf16>
    %c32 = arith.constant 32 : index
    %c0_4 = arith.constant 0 : index
    %4 = vector.load %arg1[%c32, %c0_4] : memref<160x160xbf16, #tpu.memory_space<vmem>>, vector<32x160xbf16>
    %cst_5 = arith.constant dense<0.000000e+00> : vector<12x160xf32>
    %5 = tpu.matmul %3, %4, %cst_5 {dimension_numbers = #tpu.dot_dimension_numbers<[1], [0], [0], [1], [0, 0, 1, 1], [], []>} : vector<12x32xbf16>, vector<32x160xbf16>, vector<12x160xf32> -> vector<12x160xf32>
    %6 = arith.addf %2, %5 : vector<12x160xf32>
    %c1 = arith.constant 1 : index
    %c0_6 = arith.constant 0 : index
    %7 = vector.load %arg0[%c1, %c0_6] : memref<32x128xbf16, #tpu.memory_space<vmem>>, vector<12x32xbf16>
    %c64 = arith.constant 64 : index
    %c0_7 = arith.constant 0 : index
    %8 = vector.load %arg1[%c64, %c0_7] : memref<160x160xbf16, #tpu.memory_space<vmem>>, vector<32x160xbf16>
    %cst_8 = arith.constant dense<0.000000e+00> : vector<12x160xf32>
    %9 = tpu.matmul %7, %8, %cst_8 {dimension_numbers = #tpu.dot_dimension_numbers<[1], [0], [0], [1], [0, 0, 1, 1], [], []>} : vector<12x32xbf16>, vector<32x160xbf16>, vector<12x160xf32> -> vector<12x160xf32>
    %10 = arith.addf %6, %9 : vector<12x160xf32>
    %c17 = arith.constant 17 : index
    %c0_9 = arith.constant 0 : index
    %11 = vector.load %arg0[%c17, %c0_9] : memref<32x128xbf16, #tpu.memory_space<vmem>>, vector<12x32xbf16>
    %c96 = arith.constant 96 : index
    %c0_10 = arith.constant 0 : index
    %12 = vector.load %arg1[%c96, %c0_10] : memref<160x160xbf16, #tpu.memory_space<vmem>>, vector<32x160xbf16>
    %cst_11 = arith.constant dense<0.000000e+00> : vector<12x160xf32>
    %13 = tpu.matmul %11, %12, %cst_11 {dimension_numbers = #tpu.dot_dimension_numbers<[1], [0], [0], [1], [0, 0, 1, 1], [], []>} : vector<12x32xbf16>, vector<32x160xbf16>, vector<12x160xf32> -> vector<12x160xf32>
    %14 = arith.addf %10, %13 : vector<12x160xf32>
    %c2 = arith.constant 2 : index
    %c0_12 = arith.constant 0 : index
    %15 = vector.load %arg0[%c2, %c0_12] : memref<32x128xbf16, #tpu.memory_space<vmem>>, vector<12x32xbf16>
    %c128 = arith.constant 128 : index
    %c0_13 = arith.constant 0 : index
    %16 = vector.load %arg1[%c128, %c0_13] : memref<160x160xbf16, #tpu.memory_space<vmem>>, vector<32x160xbf16>
    %cst_14 = arith.constant dense<0.000000e+00> : vector<12x160xf32>
    %17 = tpu.matmul %15, %16, %cst_14 {dimension_numbers = #tpu.dot_dimension_numbers<[1], [0], [0], [1], [0, 0, 1, 1], [], []>} : vector<12x32xbf16>, vector<32x160xbf16>, vector<12x160xf32> -> vector<12x160xf32>
    %18 = arith.addf %14, %17 : vector<12x160xf32>
    %c0_15 = arith.constant 0 : index
    %c0_16 = arith.constant 0 : index
    %19 = vector.load %arg2[%c0_15, %c0_16] : memref<1x160xf32, #tpu.memory_space<vmem>>, vector<1x160xf32>
    %20 = vector.broadcast %19 : vector<1x160xf32> to vector<12x160xf32>
    %21 = arith.addf %18, %20 : vector<12x160xf32>
    %cst_17 = arith.constant 0.000000e+00 : f32
    %22 = vector.broadcast %cst_17 : f32 to vector<12x160xf32>
    %23 = arith.maximumf %21, %22 : vector<12x160xf32>
    %c16_18 = arith.constant 16 : index
    %c0_19 = arith.constant 0 : index
    %24 = vector.load %arg0[%c16_18, %c0_19] : memref<32x128xbf16, #tpu.memory_space<vmem>>, vector<12x32xbf16>
    %c0_20 = arith.constant 0 : index
    %c0_21 = arith.constant 0 : index
    %25 = vector.load %arg1[%c0_20, %c0_21] : memref<160x160xbf16, #tpu.memory_space<vmem>>, vector<32x160xbf16>
    %cst_22 = arith.constant dense<0.000000e+00> : vector<12x160xf32>
    %26 = tpu.matmul %24, %25, %cst_22 {dimension_numbers = #tpu.dot_dimension_numbers<[1], [0], [0], [1], [0, 0, 1, 1], [], []>} : vector<12x32xbf16>, vector<32x160xbf16>, vector<12x160xf32> -> vector<12x160xf32>
    %c1_23 = arith.constant 1 : index
    %c0_24 = arith.constant 0 : index
    %27 = vector.load %arg0[%c1_23, %c0_24] : memref<32x128xbf16, #tpu.memory_space<vmem>>, vector<12x32xbf16>
    %c32_25 = arith.constant 32 : index
    %c0_26 = arith.constant 0 : index
    %28 = vector.load %arg1[%c32_25, %c0_26] : memref<160x160xbf16, #tpu.memory_space<vmem>>, vector<32x160xbf16>
    %cst_27 = arith.constant dense<0.000000e+00> : vector<12x160xf32>
    %29 = tpu.matmul %27, %28, %cst_27 {dimension_numbers = #tpu.dot_dimension_numbers<[1], [0], [0], [1], [0, 0, 1, 1], [], []>} : vector<12x32xbf16>, vector<32x160xbf16>, vector<12x160xf32> -> vector<12x160xf32>
    %30 = arith.addf %26, %29 : vector<12x160xf32>
    %c17_28 = arith.constant 17 : index
    %c0_29 = arith.constant 0 : index
    %31 = vector.load %arg0[%c17_28, %c0_29] : memref<32x128xbf16, #tpu.memory_space<vmem>>, vector<12x32xbf16>
    %c64_30 = arith.constant 64 : index
    %c0_31 = arith.constant 0 : index
    %32 = vector.load %arg1[%c64_30, %c0_31] : memref<160x160xbf16, #tpu.memory_space<vmem>>, vector<32x160xbf16>
    %cst_32 = arith.constant dense<0.000000e+00> : vector<12x160xf32>
    %33 = tpu.matmul %31, %32, %cst_32 {dimension_numbers = #tpu.dot_dimension_numbers<[1], [0], [0], [1], [0, 0, 1, 1], [], []>} : vector<12x32xbf16>, vector<32x160xbf16>, vector<12x160xf32> -> vector<12x160xf32>
    %34 = arith.addf %30, %33 : vector<12x160xf32>
    %c2_33 = arith.constant 2 : index
    %c0_34 = arith.constant 0 : index
    %35 = vector.load %arg0[%c2_33, %c0_34] : memref<32x128xbf16, #tpu.memory_space<vmem>>, vector<12x32xbf16>
    %c96_35 = arith.constant 96 : index
    %c0_36 = arith.constant 0 : index
    %36 = vector.load %arg1[%c96_35, %c0_36] : memref<160x160xbf16, #tpu.memory_space<vmem>>, vector<32x160xbf16>
    %cst_37 = arith.constant dense<0.000000e+00> : vector<12x160xf32>
    %37 = tpu.matmul %35, %36, %cst_37 {dimension_numbers = #tpu.dot_dimension_numbers<[1], [0], [0], [1], [0, 0, 1, 1], [], []>} : vector<12x32xbf16>, vector<32x160xbf16>, vector<12x160xf32> -> vector<12x160xf32>
    %38 = arith.addf %34, %37 : vector<12x160xf32>
    %c18 = arith.constant 18 : index
    %c0_38 = arith.constant 0 : index
    %39 = vector.load %arg0[%c18, %c0_38] : memref<32x128xbf16, #tpu.memory_space<vmem>>, vector<12x32xbf16>
    %c128_39 = arith.constant 128 : index
    %c0_40 = arith.constant 0 : index
    %40 = vector.load %arg1[%c128_39, %c0_40] : memref<160x160xbf16, #tpu.memory_space<vmem>>, vector<32x160xbf16>
    %cst_41 = arith.constant dense<0.000000e+00> : vector<12x160xf32>
    %41 = tpu.matmul %39, %40, %cst_41 {dimension_numbers = #tpu.dot_dimension_numbers<[1], [0], [0], [1], [0, 0, 1, 1], [], []>} : vector<12x32xbf16>, vector<32x160xbf16>, vector<12x160xf32> -> vector<12x160xf32>
    %42 = arith.addf %38, %41 : vector<12x160xf32>
    %c0_42 = arith.constant 0 : index
    %c0_43 = arith.constant 0 : index
    %43 = vector.load %arg2[%c0_42, %c0_43] : memref<1x160xf32, #tpu.memory_space<vmem>>, vector<1x160xf32>
    %44 = vector.broadcast %43 : vector<1x160xf32> to vector<12x160xf32>
    %45 = arith.addf %42, %44 : vector<12x160xf32>
    %cst_44 = arith.constant 0.000000e+00 : f32
    %46 = vector.broadcast %cst_44 : f32 to vector<12x160xf32>
    %47 = arith.maximumf %45, %46 : vector<12x160xf32>
    %48 = arith.maximumf %23, %47 : vector<12x160xf32>
    %49 = vector.extract_strided_slice %48 {offsets = [0, 0], sizes = [12, 144], strides = [1, 1]} : vector<12x160xf32> to vector<12x144xf32>
    %50 = vector.extract_strided_slice %48 {offsets = [0, 6], sizes = [12, 144], strides = [1, 1]} : vector<12x160xf32> to vector<12x144xf32>
    %51 = arith.maximumf %49, %50 : vector<12x144xf32>
    %52 = arith.truncf %51 : vector<12x144xf32> to vector<12x144xbf16>
    %c0_45 = arith.constant 0 : index
    %c0_46 = arith.constant 0 : index
    %53 = vector.load %arg3[%c0_45, %c0_46] : memref<144x640xbf16, #tpu.memory_space<vmem>>, vector<144x640xbf16>
    %cst_47 = arith.constant dense<0.000000e+00> : vector<12x640xf32>
    %54 = tpu.matmul %52, %53, %cst_47 {dimension_numbers = #tpu.dot_dimension_numbers<[1], [0], [0], [1], [0, 0, 1, 1], [], []>} : vector<12x144xbf16>, vector<144x640xbf16>, vector<12x640xf32> -> vector<12x640xf32>
    %55 = vector.extract_strided_slice %54 {offsets = [0, 0], sizes = [8, 128], strides = [1, 1]} : vector<12x640xf32> to vector<8x128xf32>
    %56 = vector.extract_strided_slice %54 {offsets = [1, 128], sizes = [8, 128], strides = [1, 1]} : vector<12x640xf32> to vector<8x128xf32>
    %57 = arith.addf %55, %56 : vector<8x128xf32>
    %58 = vector.extract_strided_slice %54 {offsets = [2, 256], sizes = [8, 128], strides = [1, 1]} : vector<12x640xf32> to vector<8x128xf32>
    %59 = vector.extract_strided_slice %54 {offsets = [3, 384], sizes = [8, 128], strides = [1, 1]} : vector<12x640xf32> to vector<8x128xf32>
    %60 = arith.addf %58, %59 : vector<8x128xf32>
    %61 = arith.addf %57, %60 : vector<8x128xf32>
    %62 = vector.extract_strided_slice %54 {offsets = [4, 512], sizes = [8, 128], strides = [1, 1]} : vector<12x640xf32> to vector<8x128xf32>
    %63 = arith.addf %61, %62 : vector<8x128xf32>
    %c0_48 = arith.constant 0 : index
    %c0_49 = arith.constant 0 : index
    %64 = vector.load %arg4[%c0_48, %c0_49] : memref<1x128xf32, #tpu.memory_space<vmem>>, vector<1x128xf32>
    %65 = vector.broadcast %64 : vector<1x128xf32> to vector<8x128xf32>
    %66 = arith.addf %63, %65 : vector<8x128xf32>
    %cst_50 = arith.constant 0.000000e+00 : f32
    %67 = vector.broadcast %cst_50 : f32 to vector<8x128xf32>
    %68 = arith.maximumf %66, %67 : vector<8x128xf32>
    %69 = vector.extract_strided_slice %68 {offsets = [0, 0], sizes = [7, 128], strides = [1, 1]} : vector<8x128xf32> to vector<7x128xf32>
    %70 = vector.extract_strided_slice %68 {offsets = [1, 0], sizes = [7, 128], strides = [1, 1]} : vector<8x128xf32> to vector<7x128xf32>
    %71 = arith.maximumf %69, %70 : vector<7x128xf32>
    %72 = vector.extract_strided_slice %71 {offsets = [0, 0], sizes = [7, 112], strides = [1, 1]} : vector<7x128xf32> to vector<7x112xf32>
    %73 = vector.extract_strided_slice %71 {offsets = [0, 16], sizes = [7, 112], strides = [1, 1]} : vector<7x128xf32> to vector<7x112xf32>
    %74 = arith.maximumf %72, %73 : vector<7x112xf32>
    %c0_51 = arith.constant 0 : index
    %c0_52 = arith.constant 0 : index
    %75 = vector.load %arg6[%c0_51, %c0_52] : memref<1x64xf32, #tpu.memory_space<vmem>>, vector<1x64xf32>
    %76 = vector.extract_strided_slice %74 {offsets = [0, 0], sizes = [1, 112], strides = [1, 1]} : vector<7x112xf32> to vector<1x112xf32>
    %77 = arith.truncf %76 : vector<1x112xf32> to vector<1x112xbf16>
    %c0_53 = arith.constant 0 : index
    %c0_54 = arith.constant 0 : index
    %78 = vector.load %arg5[%c0_53, %c0_54] : memref<448x64xbf16, #tpu.memory_space<vmem>>, vector<112x64xbf16>
    %cst_55 = arith.constant dense<0.000000e+00> : vector<1x64xf32>
    %79 = tpu.matmul %77, %78, %cst_55 {dimension_numbers = #tpu.dot_dimension_numbers<[1], [0], [0], [1], [0, 0, 1, 1], [], []>} : vector<1x112xbf16>, vector<112x64xbf16>, vector<1x64xf32> -> vector<1x64xf32>
    %80 = arith.addf %75, %79 : vector<1x64xf32>
    %81 = vector.extract_strided_slice %74 {offsets = [2, 0], sizes = [1, 112], strides = [1, 1]} : vector<7x112xf32> to vector<1x112xf32>
    %82 = arith.truncf %81 : vector<1x112xf32> to vector<1x112xbf16>
    %c112 = arith.constant 112 : index
    %c0_56 = arith.constant 0 : index
    %83 = vector.load %arg5[%c112, %c0_56] : memref<448x64xbf16, #tpu.memory_space<vmem>>, vector<112x64xbf16>
    %cst_57 = arith.constant dense<0.000000e+00> : vector<1x64xf32>
    %84 = tpu.matmul %82, %83, %cst_57 {dimension_numbers = #tpu.dot_dimension_numbers<[1], [0], [0], [1], [0, 0, 1, 1], [], []>} : vector<1x112xbf16>, vector<112x64xbf16>, vector<1x64xf32> -> vector<1x64xf32>
    %85 = arith.addf %80, %84 : vector<1x64xf32>
    %86 = vector.extract_strided_slice %74 {offsets = [4, 0], sizes = [1, 112], strides = [1, 1]} : vector<7x112xf32> to vector<1x112xf32>
    %87 = arith.truncf %86 : vector<1x112xf32> to vector<1x112xbf16>
    %c224 = arith.constant 224 : index
    %c0_58 = arith.constant 0 : index
    %88 = vector.load %arg5[%c224, %c0_58] : memref<448x64xbf16, #tpu.memory_space<vmem>>, vector<112x64xbf16>
    %cst_59 = arith.constant dense<0.000000e+00> : vector<1x64xf32>
    %89 = tpu.matmul %87, %88, %cst_59 {dimension_numbers = #tpu.dot_dimension_numbers<[1], [0], [0], [1], [0, 0, 1, 1], [], []>} : vector<1x112xbf16>, vector<112x64xbf16>, vector<1x64xf32> -> vector<1x64xf32>
    %90 = arith.addf %85, %89 : vector<1x64xf32>
    %91 = vector.extract_strided_slice %74 {offsets = [6, 0], sizes = [1, 112], strides = [1, 1]} : vector<7x112xf32> to vector<1x112xf32>
    %92 = arith.truncf %91 : vector<1x112xf32> to vector<1x112xbf16>
    %c336 = arith.constant 336 : index
    %c0_60 = arith.constant 0 : index
    %93 = vector.load %arg5[%c336, %c0_60] : memref<448x64xbf16, #tpu.memory_space<vmem>>, vector<112x64xbf16>
    %cst_61 = arith.constant dense<0.000000e+00> : vector<1x64xf32>
    %94 = tpu.matmul %92, %93, %cst_61 {dimension_numbers = #tpu.dot_dimension_numbers<[1], [0], [0], [1], [0, 0, 1, 1], [], []>} : vector<1x112xbf16>, vector<112x64xbf16>, vector<1x64xf32> -> vector<1x64xf32>
    %95 = arith.addf %90, %94 : vector<1x64xf32>
    %cst_62 = arith.constant 0.000000e+00 : f32
    %96 = vector.broadcast %cst_62 : f32 to vector<1x64xf32>
    %97 = arith.maximumf %95, %96 : vector<1x64xf32>
    %c0_63 = arith.constant 0 : index
    %c0_64 = arith.constant 0 : index
    %98 = vector.load %arg7[%c0_63, %c0_64] : memref<1x64xf32, #tpu.memory_space<vmem>>, vector<1x64xf32>
    %99 = arith.mulf %97, %98 : vector<1x64xf32>
    %cst_65 = arith.constant dense<0.000000e+00> : vector<1xf32>
    %100 = vector.multi_reduction <add>, %99, %cst_65 [1] : vector<1x64xf32> to vector<1xf32>
    %101 = vector.shape_cast %100 : vector<1xf32> to vector<1x1xf32>
    %c0_66 = arith.constant 0 : index
    %c0_67 = arith.constant 0 : index
    %102 = vector.load %arg8[%c0_66, %c0_67] : memref<1x1xf32, #tpu.memory_space<vmem>>, vector<1x1xf32>
    %103 = arith.addf %101, %102 : vector<1x1xf32>
    %cst_68 = arith.constant 6.28318548 : f32
    %104 = vector.broadcast %cst_68 : f32 to vector<1x1xf32>
    %105 = arith.divf %103, %104 : vector<1x1xf32>
    %cst_69 = arith.constant 5.000000e-01 : f32
    %106 = vector.broadcast %cst_69 : f32 to vector<1x1xf32>
    %107 = arith.addf %105, %106 : vector<1x1xf32>
    %108 = math.floor %107 : vector<1x1xf32>
    %cst_70 = arith.constant 6.28318548 : f32
    %109 = vector.broadcast %cst_70 : f32 to vector<1x1xf32>
    %110 = arith.mulf %108, %109 : vector<1x1xf32>
    %111 = arith.subf %103, %110 : vector<1x1xf32>
    %cst_71 = arith.constant 1.57079637 : f32
    %112 = vector.broadcast %cst_71 : f32 to vector<1x1xf32>
    %113 = arith.cmpf ogt, %111, %112 : vector<1x1xf32>
    %cst_72 = arith.constant 3.14159274 : f32
    %114 = vector.broadcast %cst_72 : f32 to vector<1x1xf32>
    %115 = arith.subf %114, %111 : vector<1x1xf32>
    %116 = arith.select %113, %115, %111 : vector<1x1xi1>, vector<1x1xf32>
    %cst_73 = arith.constant -1.57079637 : f32
    %117 = vector.broadcast %cst_73 : f32 to vector<1x1xf32>
    %118 = arith.cmpf olt, %116, %117 : vector<1x1xf32>
    %cst_74 = arith.constant -3.14159274 : f32
    %119 = vector.broadcast %cst_74 : f32 to vector<1x1xf32>
    %120 = arith.subf %119, %116 : vector<1x1xf32>
    %121 = arith.select %118, %120, %116 : vector<1x1xi1>, vector<1x1xf32>
    %122 = arith.mulf %121, %121 : vector<1x1xf32>
    %cst_75 = arith.constant 2.75573188E-6 : f32
    %123 = vector.broadcast %cst_75 : f32 to vector<1x1xf32>
    %124 = arith.mulf %122, %123 : vector<1x1xf32>
    %cst_76 = arith.constant -1.98412701E-4 : f32
    %125 = vector.broadcast %cst_76 : f32 to vector<1x1xf32>
    %126 = arith.addf %125, %124 : vector<1x1xf32>
    %127 = arith.mulf %122, %126 : vector<1x1xf32>
    %cst_77 = arith.constant 0.00833333377 : f32
    %128 = vector.broadcast %cst_77 : f32 to vector<1x1xf32>
    %129 = arith.addf %128, %127 : vector<1x1xf32>
    %130 = arith.mulf %122, %129 : vector<1x1xf32>
    %cst_78 = arith.constant -0.166666672 : f32
    %131 = vector.broadcast %cst_78 : f32 to vector<1x1xf32>
    %132 = arith.addf %131, %130 : vector<1x1xf32>
    %133 = arith.mulf %122, %132 : vector<1x1xf32>
    %cst_79 = arith.constant 1.000000e+00 : f32
    %134 = vector.broadcast %cst_79 : f32 to vector<1x1xf32>
    %135 = arith.addf %134, %133 : vector<1x1xf32>
    %136 = arith.mulf %121, %135 : vector<1x1xf32>
    %cst_80 = arith.constant 1.000000e+00 : f32
    %137 = vector.broadcast %cst_80 : f32 to vector<1x1xf32>
    %138 = arith.addf %137, %136 : vector<1x1xf32>
    %cst_81 = arith.constant 5.000000e-01 : f32
    %139 = vector.broadcast %cst_81 : f32 to vector<1x1xf32>
    %140 = arith.mulf %139, %138 : vector<1x1xf32>
    %141 = tpu.iota {dimensions = array<i32: 1>} : vector<1x2xi32>
    %c0_i32 = arith.constant 0 : i32
    %142 = vector.broadcast %c0_i32 : i32 to vector<1x2xi32>
    %143 = arith.cmpi eq, %141, %142 : vector<1x2xi32>
    %cst_82 = arith.constant 1.000000e+00 : f32
    %144 = vector.broadcast %cst_82 : f32 to vector<1x1xf32>
    %145 = arith.subf %144, %140 : vector<1x1xf32>
    %146 = vector.shape_cast %140 : vector<1x1xf32> to vector<1x1xf32>
    %147 = vector.broadcast %146 : vector<1x1xf32> to vector<1x2xf32>
    %148 = vector.shape_cast %145 : vector<1x1xf32> to vector<1x1xf32>
    %149 = vector.broadcast %148 : vector<1x1xf32> to vector<1x2xf32>
    %150 = arith.select %143, %147, %149 : vector<1x2xi1>, vector<1x2xf32>
    %c0_83 = arith.constant 0 : index
    %c0_84 = arith.constant 0 : index
    %151 = vector.load %arg9[%c0_83, %c0_84] : memref<1x2xf32, #tpu.memory_space<vmem>>, vector<1x2xf32>
    tpu.vector_store %arg9[%c0_83, %c0_84], %150 {strides = array<i32>} : memref<1x2xf32, #tpu.memory_space<vmem>>, vector<1x2xf32>,
    return
  }
}

</mosaic_0001>

<llo_original>
// kernel: net_forward.1
$region0: #{net_forward.1}
  #allocation0 [shape = 'u32[]', space=smem, size = 0x4, offset = 0x4, fixed_abs, tag = 'smem constant byte address 0x4 - core index']
  #allocation1 [shape = 'u32[144,128]{1,0:T(1,128)}', space=vmem, size = 0x12000, scoped, tag = 'internal scratch']
  #allocation2 [shape = 'f32[1,1]{1,0:T(1,128)S(1)}', space=vmem, size = 0x200, scoped, tag = 'scoped memory for net_forward.1']
  %s0 = inlined_call_operand.vmem [shape: bf16[32,128], index: 0, kind: input, shape index: {}]
  %s1 = inlined_call_operand.hbm [shape: bf16[160,160], index: 1, kind: input, shape index: {}]
  %s2 = inlined_call_operand.vmem [shape: f32[1,160], index: 2, kind: input, shape index: {}]
  %s3 = inlined_call_operand.vmem [shape: bf16[144,640], index: 3, kind: input, shape index: {}]
  %s4 = inlined_call_operand.vmem [shape: f32[1,128], index: 4, kind: input, shape index: {}]
  %s5 = inlined_call_operand.vmem [shape: bf16[448,64], index: 5, kind: input, shape index: {}]
  %s6 = inlined_call_operand.vmem [shape: f32[1,64], index: 6, kind: input, shape index: {}]
  %s7 = inlined_call_operand.vmem [shape: f32[1,64], index: 7, kind: input, shape index: {}]
  %s8 = inlined_call_operand.<no memory space> [shape: f32[1,1], index: 8, kind: input, shape index: {}]
  %s9 = inlined_call_operand.hbm [shape: f32[1,2], index: 9, kind: output, shape index: {}]
  %s10 = sld [smem:[#allocation0]]
  $region50: #{net_forward.1} parent=0
    _
  %s12 = ssub.s32 1, %s10
  %s13 = scalar_select 0, %s12, %s10
  %v14 = vstv %s8
  %15 = vst [vmem:[#allocation2] sm:$0x1] %v14
  $region1: #{net_forward.1} parent=0
    #allocation3 [shape = 'u8[81920]{0}', space=vmem, size = 0x14000, scoped, tag = 'input window, operand 1, single buffered']
    #allocation4 [shape = 's32[1]{0}', space=sflag, size = 0x4, scoped, tag = 'scoped memory for net_forward.1']
    #allocation5 [shape = 's32[1]{0}', space=sflag, size = 0x4, scoped, tag = 'scoped memory for net_forward.1']
    #allocation6 [shape = 'u8[512]{0}', space=vmem, size = 0x400, scoped, tag = 'output window, operand 0, single buffered']
    %16 = vsyncpa [#allocation4], 0
    %17 = vsyncpa [#allocation5], 0
    // Predicated region
    $region2: #{net_forward.1} parent=1 // pred_check
      _
    $region3: #{net_forward.1} parent=1 // pred_check_branch
      %19 = sbr.rel (0) target = $region5
    $region4: #{net_forward.1} parent=1 // pred_region
      _
    $region5: #{net_forward.1} parent=1 // pred_fallthru
      _
    // Predicated region
    $region6: #{net_forward.1} parent=1 // pred_check
      _
    $region7: #{net_forward.1} parent=1 // pred_check_branch
      %21 = sbr.rel (0) target = $region9
    $region8: #{net_forward.1} parent=1 // pred_region
      %s23 = ssub.s32 2560, 2560
      %24 = vsyncadd [#allocation4], %s23
      %s25 = sshll.u32 [#allocation3], 4
      %s26 = int_to_ptr.vmem [resolvable:$true] %s25
      %31 = dma.hbm_to_vmem [thread:$0]  %s1, 2560, %s26, [#allocation4], 128, 128, 8
    $region9: #{net_forward.1} parent=1 // pred_fallthru
      _
    // Predicated region
    $region10: #{net_forward.1} parent=1 // pred_check
      _
    $region11: #{net_forward.1} parent=1 // pred_check_branch
      %33 = sbr.rel (0) target = $region13
    $region12: #{net_forward.1} parent=1 // pred_region
      _
    $region13: #{net_forward.1} parent=1 // pred_fallthru
      _
    // Predicated region
    $region14: #{net_forward.1} parent=1 // pred_check
      _
    $region15: #{net_forward.1} parent=1 // pred_check_branch
      %35 = sbr.rel (0) target = $region17
    $region16: #{net_forward.1} parent=1 // pred_region
      _
    $region17: #{net_forward.1} parent=1 // pred_fallthru
      _
    // Predicated region
    $region18: #{net_forward.1} parent=1 // pred_check
      _
    $region19: #{net_forward.1} parent=1 // pred_check_branch
      %37 = sbr.rel (0) target = $region21
    $region20: #{net_forward.1} parent=1 // pred_region
      _
    $region21: #{net_forward.1} parent=1 // pred_fallthru
      _
    // Predicated region
    $region22: #{net_forward.1} parent=1 // pred_check
      _
    $region23: #{net_forward.1} parent=1 // pred_check_branch
      %39 = sbr.rel (0) target = $region25
    $region24: #{net_forward.1} parent=1 // pred_region
      _
    $region25: #{net_forward.1} parent=1 // pred_fallthru
      _
    // Predicated region
    $region26: #{net_forward.1} parent=1 // pred_check
      _
    $region27: #{net_forward.1} parent=1 // pred_check_branch
      %41 = sbr.rel (0) target = $region29
    $region28: #{net_forward.1} parent=1 // pred_region
      _
    $region29: #{net_forward.1} parent=1 // pred_fallthru
      _
    // Predicated region
    $region30: #{net_forward.1} parent=1 // pred_check
      _
    $region31: #{net_forward.1} parent=1 // pred_check_branch
      %43 = sbr.rel (0) target = $region33
    $region32: #{net_forward.1} parent=1 // pred_region
      _
    $region33: #{net_forward.1} parent=1 // pred_fallthru
      _
    // Predicated region
    $region34: #{net_forward.1} parent=1 // pred_check
      _
    $region35: #{net_forward.1} parent=1 // pred_check_branch
      %45 = sbr.rel (0) target = $region37
    $region36: #{net_forward.1} parent=1 // pred_region
      _
    $region37: #{net_forward.1} parent=1 // pred_fallthru
      _
    // Predicated region
    $region38: #{net_forward.1} parent=1 // pred_check
      _
    $region39: #{net_forward.1} parent=1 // pred_check_branch
      %47 = sbr.rel (0) target = $region41
    $region40: #{net_forward.1} parent=1 // pred_region
      %48 = dma.done [#allocation4], 2560
    $region41: #{net_forward.1} parent=1 // pred_fallthru
      _
    %v50 = vld [vmem:[%s0] sm:$0xf]
    %v51 = vld [vmem:[%s0 + $0x4] sm:$0x3]
    %v52 = vld [vmem:[#allocation3] sm:$0xff]
    %v53 = vld [vmem:[#allocation3 + $0x8] sm:$0xff]
    %v54 = vld [vmem:[#allocation3 + $0x10] sm:$0xff]
    %v55 = vld [vmem:[#allocation3 + $0x18] sm:$0xff]
    %v56 = vld [vmem:[%s0 + $0x8] sm:$0xf]
    %v57 = vld [vmem:[%s0 + $0xc] sm:$0x3]
    %v58 = vld [vmem:[#allocation3 + $0x20] sm:$0xff]
    %v59 = vld [vmem:[#allocation3 + $0x28] sm:$0xff]
    %v60 = vld [vmem:[#allocation3 + $0x30] sm:$0xff]
    %v61 = vld [vmem:[#allocation3 + $0x38] sm:$0xff]
    %v64 = vunpack.c.l.b16 %v56
    %v65 = vunpack.c.l.b16 %v57
    %v66 = vpack.c.b16 %v65, %v64
    %v71 = vunpack.c.l.b16 %v58
    %v72 = vunpack.c.h.b16 %v58
    %v73 = vunpack.c.l.b16 %v59
    %v74 = vunpack.c.h.b16 %v59
    %v75 = vunpack.c.l.b16 %v60
    %v76 = vunpack.c.h.b16 %v60
    %v77 = vunpack.c.l.b16 %v61
    %v78 = vunpack.c.h.b16 %v61
    %v79 = vpack.c.b16 %v73, %v71
    %v80 = vpack.c.b16 %v74, %v72
    %v81 = vpack.c.b16 %v77, %v75
    %v82 = vpack.c.b16 %v78, %v76
    %vm87 = vcmask 261120
    %v89 = vsel %vm87, %v66, 0
    %91 = vmatprep.subr.bf16.mxu0 0
    %92 = vmatpush1.bf16.msra.mxu0 0
    %93 = vmatprep.subr.bf16.mxu0 0
    %94 = vmatpush1.bf16.msra.mxu0 0
    %95 = vmatprep.subr.bf16.mxu0 0
    %96 = vmatpush1.bf16.msra.mxu0 0
    %97 = vmatprep.subr.bf16.mxu0 0
    %98 = vmatpush1.bf16.msra.mxu0 0
    %99 = vmatprep.subr.bf16.mxu0 0
    %100 = vmatpush1.bf16.msra.mxu0 0
    %101 = vmatprep.subr.bf16.mxu0 0
    %102 = vmatpush1.bf16.msra.mxu0 0
    %103 = vmatprep.subr.bf16.mxu0 %v82
    %104 = vmatpush1.bf16.msra.mxu0 %v81
    %105 = vmatprep.subr.bf16.mxu0 %v80
    %106 = vmatpush1.bf16.msra.mxu0 %v79
    %107 = vmatprep.subr.bf16.mxu0 0
    %108 = vmatpush2.bf16.msra.mxu0 0
    %109 = vmatprep.subr.bf16.mxu0 0
    %110 = vmatpush2.bf16.msra.mxu0 0
    %111 = vmatprep.subr.bf16.mxu0 0
    %112 = vmatpush2.bf16.msra.mxu0 0
    %113 = vmatprep.subr.bf16.mxu0 0
    %114 = vmatpush2.bf16.msra.mxu0 0
    %115 = vmatprep.subr.bf16.mxu0 0
    %116 = vmatpush2.bf16.msra.mxu0 0
    %117 = vmatprep.subr.bf16.mxu0 0
    %118 = vmatpush2.bf16.msra.mxu0 0
    %119 = vmatprep.subr.bf16.mxu0 0
    %120 = vmatpush2.bf16.msra.mxu0 0
    %121 = vmatprep.subr.bf16.mxu0 0
    %122 = vmatpush2.bf16.msra.mxu0 0
    %123 = vmatprep.mubr.bf16.mxu0 0
    %124 = vmatmul.mubr.bf16.gmra.mxu0 %v89
    %v125 = vpop.f32.mrf.mxu0
    %v126 = vadd.f32 0.0, %v125
    %v127 = vpop.f32.mrf.mxu0
    %v128 = vadd.f32 0.0, %v127
    %v129 = vpop.f32.mrf.mxu0
    %v130 = vadd.f32 0.0, %v129
    %v131 = vpop.f32.mrf.mxu0
    %v132 = vadd.f32 0.0, %v131
    %133 = vdwg.mxu0
    %v136 = vunpack.c.l.b16 %v50
    %v137 = vunpack.c.l.b16 %v51
    %v138 = vpack.c.b16 %v137, %v136
    %v143 = vunpack.c.l.b16 %v52
    %v144 = vunpack.c.h.b16 %v52
    %v145 = vunpack.c.l.b16 %v53
    %v146 = vunpack.c.h.b16 %v53
    %v147 = vunpack.c.l.b16 %v54
    %v148 = vunpack.c.h.b16 %v54
    %v149 = vunpack.c.l.b16 %v55
    %v150 = vunpack.c.h.b16 %v55
    %v151 = vpack.c.b16 %v145, %v143
    %v152 = vpack.c.b16 %v146, %v144
    %v153 = vpack.c.b16 %v149, %v147
    %v154 = vpack.c.b16 %v150, %v148
    %v160 = vsel %vm87, %v138, 0
    %162 = vmatprep.subr.bf16.mxu0 0
    %163 = vmatpush1.bf16.msra.mxu0 0
    %164 = vmatprep.subr.bf16.mxu0 0
    %165 = vmatpush1.bf16.msra.mxu0 0
    %166 = vmatprep.subr.bf16.mxu0 0
    %167 = vmatpush1.bf16.msra.mxu0 0
    %168 = vmatprep.subr.bf16.mxu0 0
    %169 = vmatpush1.bf16.msra.mxu0 0
    %170 = vmatprep.subr.bf16.mxu0 0
    %171 = vmatpush1.bf16.msra.mxu0 0
    %172 = vmatprep.subr.bf16.mxu0 0
    %173 = vmatpush1.bf16.msra.mxu0 0
    %174 = vmatprep.subr.bf16.mxu0 %v154
    %175 = vmatpush1.bf16.msra.mxu0 %v153
    %176 = vmatprep.subr.bf16.mxu0 %v152
    %177 = vmatpush1.bf16.msra.mxu0 %v151
    %178 = vmatprep.subr.bf16.mxu0 0
    %179 = vmatpush2.bf16.msra.mxu0 0
    %180 = vmatprep.subr.bf16.mxu0 0
    %181 = vmatpush2.bf16.msra.mxu0 0
    %182 = vmatprep.subr.bf16.mxu0 0
    %183 = vmatpush2.bf16.msra.mxu0 0
    %184 = vmatprep.subr.bf16.mxu0 0
    %185 = vmatpush2.bf16.msra.mxu0 0
    %186 = vmatprep.subr.bf16.mxu0 0
    %187 = vmatpush2.bf16.msra.mxu0 0
    %188 = vmatprep.subr.bf16.mxu0 0
    %189 = vmatpush2.bf16.msra.mxu0 0
    %190 = vmatprep.subr.bf16.mxu0 0
    %191 = vmatpush2.bf16.msra.mxu0 0
    %192 = vmatprep.subr.bf16.mxu0 0
    %193 = vmatpush2.bf16.msra.mxu0 0
    %194 = vmatprep.mubr.bf16.mxu0 0
    %195 = vmatmul.mubr.bf16.gmra.mxu0 %v160
    %v196 = vpop.f32.mrf.mxu0
    %v197 = vadd.f32 %v126, %v196
    %v198 = vpop.f32.mrf.mxu0
    %v199 = vadd.f32 %v128, %v198
    %v200 = vpop.f32.mrf.mxu0
    %v201 = vadd.f32 %v130, %v200
    %v202 = vpop.f32.mrf.mxu0
    %v203 = vadd.f32 %v132, %v202
    %204 = vdwg.mxu0
    %v205 = vld [vmem:[%s0 + $0x4] sm:$0x7]
    %v206 = vld [vmem:[#allocation3 + $0x40] sm:$0xff]
    %v207 = vld [vmem:[#allocation3 + $0x48] sm:$0xff]
    %v208 = vld [vmem:[#allocation3 + $0x50] sm:$0xff]
    %v209 = vld [vmem:[#allocation3 + $0x58] sm:$0xff]
    %v211 = vunpack.c.l.b16 %v205
    %v212 = vpack.c.b16 %v211, %v136
    %v214 = vshrl.u32 %v212, 16
    %v216 = vshll.u32 %v212, 16
    %v218 = vrot.slane %v216, 1
    %v219 = vor.u32 %v214, %v218
    %v224 = vunpack.c.l.b16 %v206
    %v225 = vunpack.c.h.b16 %v206
    %v226 = vunpack.c.l.b16 %v207
    %v227 = vunpack.c.h.b16 %v207
    %v228 = vunpack.c.l.b16 %v208
    %v229 = vunpack.c.h.b16 %v208
    %v230 = vunpack.c.l.b16 %v209
    %v231 = vunpack.c.h.b16 %v209
    %v232 = vpack.c.b16 %v226, %v224
    %v233 = vpack.c.b16 %v227, %v225
    %v234 = vpack.c.b16 %v230, %v228
    %v235 = vpack.c.b16 %v231, %v229
    %v241 = vsel %vm87, %v219, 0
    %243 = vmatprep.subr.bf16.mxu0 0
    %244 = vmatpush1.bf16.msra.mxu0 0
    %245 = vmatprep.subr.bf16.mxu0 0
    %246 = vmatpush1.bf16.msra.mxu0 0
    %247 = vmatprep.subr.bf16.mxu0 0
    %248 = vmatpush1.bf16.msra.mxu0 0
    %249 = vmatprep.subr.bf16.mxu0 0
    %250 = vmatpush1.bf16.msra.mxu0 0
    %251 = vmatprep.subr.bf16.mxu0 0
    %252 = vmatpush1.bf16.msra.mxu0 0
    %253 = vmatprep.subr.bf16.mxu0 0
    %254 = vmatpush1.bf16.msra.mxu0 0
    %255 = vmatprep.subr.bf16.mxu0 %v235
    %256 = vmatpush1.bf16.msra.mxu0 %v234
    %257 = vmatprep.subr.bf16.mxu0 %v233
    %258 = vmatpush1.bf16.msra.mxu0 %v232
    %259 = vmatprep.subr.bf16.mxu0 0
    %260 = vmatpush2.bf16.msra.mxu0 0
    %261 = vmatprep.subr.bf16.mxu0 0
    %262 = vmatpush2.bf16.msra.mxu0 0
    %263 = vmatprep.subr.bf16.mxu0 0
    %264 = vmatpush2.bf16.msra.mxu0 0
    %265 = vmatprep.subr.bf16.mxu0 0
    %266 = vmatpush2.bf16.msra.mxu0 0
    %267 = vmatprep.subr.bf16.mxu0 0
    %268 = vmatpush2.bf16.msra.mxu0 0
    %269 = vmatprep.subr.bf16.mxu0 0
    %270 = vmatpush2.bf16.msra.mxu0 0
    %271 = vmatprep.subr.bf16.mxu0 0
    %272 = vmatpush2.bf16.msra.mxu0 0
    %273 = vmatprep.subr.bf16.mxu0 0
    %274 = vmatpush2.bf16.msra.mxu0 0
    %275 = vmatprep.mubr.bf16.mxu0 0
    %276 = vmatmul.mubr.bf16.gmra.mxu0 %v241
    %v277 = vpop.f32.mrf.mxu0
    %v278 = vadd.f32 0.0, %v277
    %v279 = vpop.f32.mrf.mxu0
    %v280 = vadd.f32 0.0, %v279
    %v281 = vpop.f32.mrf.mxu0
    %v282 = vadd.f32 0.0, %v281
    %v283 = vpop.f32.mrf.mxu0
    %v284 = vadd.f32 0.0, %v283
    %285 = vdwg.mxu0
    %v286 = vadd.f32 %v197, %v278
    %v287 = vadd.f32 %v199, %v280
    %v288 = vadd.f32 %v201, %v282
    %v289 = vadd.f32 %v203, %v284
    %v290 = vld [vmem:[%s0 + $0xc] sm:$0x7]
    %v291 = vld [vmem:[#allocation3 + $0x60] sm:$0xff]
    %v292 = vld [vmem:[#allocation3 + $0x68] sm:$0xff]
    %v293 = vld [vmem:[#allocation3 + $0x70] sm:$0xff]
    %v294 = vld [vmem:[#allocation3 + $0x78] sm:$0xff]
    %v296 = vunpack.c.l.b16 %v290
    %v297 = vpack.c.b16 %v296, %v64
    %v299 = vshrl.u32 %v297, 16
    %v301 = vshll.u32 %v297, 16
    %v303 = vrot.slane %v301, 1
    %v304 = vor.u32 %v299, %v303
    %v309 = vunpack.c.l.b16 %v291
    %v310 = vunpack.c.h.b16 %v291
    %v311 = vunpack.c.l.b16 %v292
    %v312 = vunpack.c.h.b16 %v292
    %v313 = vunpack.c.l.b16 %v293
    %v314 = vunpack.c.h.b16 %v293
    %v315 = vunpack.c.l.b16 %v294
    %v316 = vunpack.c.h.b16 %v294
    %v317 = vpack.c.b16 %v311, %v309
    %v318 = vpack.c.b16 %v312, %v310
    %v319 = vpack.c.b16 %v315, %v313
    %v320 = vpack.c.b16 %v316, %v314
    %v326 = vsel %vm87, %v304, 0
    %328 = vmatprep.subr.bf16.mxu0 0
    %329 = vmatpush1.bf16.msra.mxu0 0
    %330 = vmatprep.subr.bf16.mxu0 0
    %331 = vmatpush1.bf16.msra.mxu0 0
    %332 = vmatprep.subr.bf16.mxu0 0
    %333 = vmatpush1.bf16.msra.mxu0 0
    %334 = vmatprep.subr.bf16.mxu0 0
    %335 = vmatpush1.bf16.msra.mxu0 0
    %336 = vmatprep.subr.bf16.mxu0 0
    %337 = vmatpush1.bf16.msra.mxu0 0
    %338 = vmatprep.subr.bf16.mxu0 0
    %339 = vmatpush1.bf16.msra.mxu0 0
    %340 = vmatprep.subr.bf16.mxu0 %v320
    %341 = vmatpush1.bf16.msra.mxu0 %v319
    %342 = vmatprep.subr.bf16.mxu0 %v318
    %343 = vmatpush1.bf16.msra.mxu0 %v317
    %344 = vmatprep.subr.bf16.mxu0 0
    %345 = vmatpush2.bf16.msra.mxu0 0
    %346 = vmatprep.subr.bf16.mxu0 0
    %347 = vmatpush2.bf16.msra.mxu0 0
    %348 = vmatprep.subr.bf16.mxu0 0
    %349 = vmatpush2.bf16.msra.mxu0 0
    %350 = vmatprep.subr.bf16.mxu0 0
    %351 = vmatpush2.bf16.msra.mxu0 0
    %352 = vmatprep.subr.bf16.mxu0 0
    %353 = vmatpush2.bf16.msra.mxu0 0
    %354 = vmatprep.subr.bf16.mxu0 0
    %355 = vmatpush2.bf16.msra.mxu0 0
    %356 = vmatprep.subr.bf16.mxu0 0
    %357 = vmatpush2.bf16.msra.mxu0 0
    %358 = vmatprep.subr.bf16.mxu0 0
    %359 = vmatpush2.bf16.msra.mxu0 0
    %360 = vmatprep.mubr.bf16.mxu0 0
    %361 = vmatmul.mubr.bf16.gmra.mxu0 %v326
    %v362 = vpop.f32.mrf.mxu0
    %v363 = vadd.f32 0.0, %v362
    %v364 = vpop.f32.mrf.mxu0
    %v365 = vadd.f32 0.0, %v364
    %v366 = vpop.f32.mrf.mxu0
    %v367 = vadd.f32 0.0, %v366
    %v368 = vpop.f32.mrf.mxu0
    %v369 = vadd.f32 0.0, %v368
    %370 = vdwg.mxu0
    %v371 = vadd.f32 %v286, %v363
    %v372 = vadd.f32 %v287, %v365
    %v373 = vadd.f32 %v288, %v367
    %v374 = vadd.f32 %v289, %v369
    %v375 = vld [vmem:[%s0] sm:$0xe]
    %v376 = vld [vmem:[#allocation3 + $0x80] sm:$0xff]
    %v377 = vld [vmem:[#allocation3 + $0x88] sm:$0xff]
    %v378 = vld [vmem:[#allocation3 + $0x90] sm:$0xff]
    %v379 = vld [vmem:[#allocation3 + $0x98] sm:$0xff]
    %v381 = vunpack.c.l.b16 %v375
    %v382 = vpack.c.b16 %v211, %v381
    %v383 = vrot.slane %v382, 1
    %v388 = vunpack.c.l.b16 %v376
    %v389 = vunpack.c.h.b16 %v376
    %v390 = vunpack.c.l.b16 %v377
    %v391 = vunpack.c.h.b16 %v377
    %v392 = vunpack.c.l.b16 %v378
    %v393 = vunpack.c.h.b16 %v378
    %v394 = vunpack.c.l.b16 %v379
    %v395 = vunpack.c.h.b16 %v379
    %v396 = vpack.c.b16 %v390, %v388
    %v397 = vpack.c.b16 %v391, %v389
    %v398 = vpack.c.b16 %v394, %v392
    %v399 = vpack.c.b16 %v395, %v393
    %v405 = vsel %vm87, %v383, 0
    %407 = vmatprep.subr.bf16.mxu0 0
    %408 = vmatpush1.bf16.msra.mxu0 0
    %409 = vmatprep.subr.bf16.mxu0 0
    %410 = vmatpush1.bf16.msra.mxu0 0
    %411 = vmatprep.subr.bf16.mxu0 0
    %412 = vmatpush1.bf16.msra.mxu0 0
    %413 = vmatprep.subr.bf16.mxu0 0
    %414 = vmatpush1.bf16.msra.mxu0 0
    %415 = vmatprep.subr.bf16.mxu0 0
    %416 = vmatpush1.bf16.msra.mxu0 0
    %417 = vmatprep.subr.bf16.mxu0 0
    %418 = vmatpush1.bf16.msra.mxu0 0
    %419 = vmatprep.subr.bf16.mxu0 %v399
    %420 = vmatpush1.bf16.msra.mxu0 %v398
    %421 = vmatprep.subr.bf16.mxu0 %v397
    %422 = vmatpush1.bf16.msra.mxu0 %v396
    %423 = vmatprep.subr.bf16.mxu0 0
    %424 = vmatpush2.bf16.msra.mxu0 0
    %425 = vmatprep.subr.bf16.mxu0 0
    %426 = vmatpush2.bf16.msra.mxu0 0
    %427 = vmatprep.subr.bf16.mxu0 0
    %428 = vmatpush2.bf16.msra.mxu0 0
    %429 = vmatprep.subr.bf16.mxu0 0
    %430 = vmatpush2.bf16.msra.mxu0 0
    %431 = vmatprep.subr.bf16.mxu0 0
    %432 = vmatpush2.bf16.msra.mxu0 0
    %433 = vmatprep.subr.bf16.mxu0 0
    %434 = vmatpush2.bf16.msra.mxu0 0
    %435 = vmatprep.subr.bf16.mxu0 0
    %436 = vmatpush2.bf16.msra.mxu0 0
    %437 = vmatprep.subr.bf16.mxu0 0
    %438 = vmatpush2.bf16.msra.mxu0 0
    %439 = vmatprep.mubr.bf16.mxu0 0
    %440 = vmatmul.mubr.bf16.gmra.mxu0 %v405
    %v441 = vpop.f32.mrf.mxu0
    %v442 = vadd.f32 0.0, %v441
    %v443 = vpop.f32.mrf.mxu0
    %v444 = vadd.f32 0.0, %v443
    %v445 = vpop.f32.mrf.mxu0
    %v446 = vadd.f32 0.0, %v445
    %v447 = vpop.f32.mrf.mxu0
    %v448 = vadd.f32 0.0, %v447
    %449 = vdwg.mxu0
    %v450 = vadd.f32 %v371, %v442
    %v451 = vadd.f32 %v372, %v444
    %v452 = vadd.f32 %v373, %v446
    %v453 = vadd.f32 %v374, %v448
    %v454 = vld [vmem:[%s2] sm:$0x3]
    %v456 = vlaneseq
    %v457 = vshrl.u32 %v456, 7
    %v458 = vsub.s32 0, %v457
    %v459 = vrot.slane %v454, %v458
    %v460 = vlaneseq
    %v461 = vshrl.u32 %v460, 7
    %v462 = vsub.s32 1, %v461
    %v463 = vrot.slane %v454, %v462
    %v466 = vadd.f32 %v450, %v459
    %v467 = vadd.f32 %v451, %v463
    %v468 = vadd.f32 %v452, %v459
    %v469 = vadd.f32 %v453, %v463
    %v470 = vmax.f32 %v466, 0.0
    %v471 = vmax.f32 %v467, 0.0
    %v472 = vmax.f32 %v468, 0.0
    %v473 = vmax.f32 %v469, 0.0
    %474 = vmatprep.subr.bf16.mxu0 0
    %475 = vmatpush1.bf16.msra.mxu0 0
    %476 = vmatprep.subr.bf16.mxu0 0
    %477 = vmatpush1.bf16.msra.mxu0 0
    %478 = vmatprep.subr.bf16.mxu0 0
    %479 = vmatpush1.bf16.msra.mxu0 0
    %480 = vmatprep.subr.bf16.mxu0 0
    %481 = vmatpush1.bf16.msra.mxu0 0
    %482 = vmatprep.subr.bf16.mxu0 0
    %483 = vmatpush1.bf16.msra.mxu0 0
    %484 = vmatprep.subr.bf16.mxu0 0
    %485 = vmatpush1.bf16.msra.mxu0 0
    %486 = vmatprep.subr.bf16.mxu0 %v82
    %487 = vmatpush1.bf16.msra.mxu0 %v81
    %488 = vmatprep.subr.bf16.mxu0 %v80
    %489 = vmatpush1.bf16.msra.mxu0 %v79
    %490 = vmatprep.subr.bf16.mxu0 0
    %491 = vmatpush2.bf16.msra.mxu0 0
    %492 = vmatprep.subr.bf16.mxu0 0
    %493 = vmatpush2.bf16.msra.mxu0 0
    %494 = vmatprep.subr.bf16.mxu0 0
    %495 = vmatpush2.bf16.msra.mxu0 0
    %496 = vmatprep.subr.bf16.mxu0 0
    %497 = vmatpush2.bf16.msra.mxu0 0
    %498 = vmatprep.subr.bf16.mxu0 0
    %499 = vmatpush2.bf16.msra.mxu0 0
    %500 = vmatprep.subr.bf16.mxu0 0
    %501 = vmatpush2.bf16.msra.mxu0 0
    %502 = vmatprep.subr.bf16.mxu0 0
    %503 = vmatpush2.bf16.msra.mxu0 0
    %504 = vmatprep.subr.bf16.mxu0 0
    %505 = vmatpush2.bf16.msra.mxu0 0
    %506 = vmatprep.mubr.bf16.mxu0 0
    %507 = vmatmul.mubr.bf16.gmra.mxu0 %v241
    %v508 = vpop.f32.mrf.mxu0
    %v509 = vadd.f32 0.0, %v508
    %v510 = vpop.f32.mrf.mxu0
    %v511 = vadd.f32 0.0, %v510
    %v512 = vpop.f32.mrf.mxu0
    %v513 = vadd.f32 0.0, %v512
    %v514 = vpop.f32.mrf.mxu0
    %v515 = vadd.f32 0.0, %v514
    %516 = vdwg.mxu0
    %517 = vmatprep.subr.bf16.mxu0 0
    %518 = vmatpush1.bf16.msra.mxu0 0
    %519 = vmatprep.subr.bf16.mxu0 0
    %520 = vmatpush1.bf16.msra.mxu0 0
    %521 = vmatprep.subr.bf16.mxu0 0
    %522 = vmatpush1.bf16.msra.mxu0 0
    %523 = vmatprep.subr.bf16.mxu0 0
    %524 = vmatpush1.bf16.msra.mxu0 0
    %525 = vmatprep.subr.bf16.mxu0 0
    %526 = vmatpush1.bf16.msra.mxu0 0
    %527 = vmatprep.subr.bf16.mxu0 0
    %528 = vmatpush1.bf16.msra.mxu0 0
    %529 = vmatprep.subr.bf16.mxu0 %v154
    %530 = vmatpush1.bf16.msra.mxu0 %v153
    %531 = vmatprep.subr.bf16.mxu0 %v152
    %532 = vmatpush1.bf16.msra.mxu0 %v151
    %533 = vmatprep.subr.bf16.mxu0 0
    %534 = vmatpush2.bf16.msra.mxu0 0
    %535 = vmatprep.subr.bf16.mxu0 0
    %536 = vmatpush2.bf16.msra.mxu0 0
    %537 = vmatprep.subr.bf16.mxu0 0
    %538 = vmatpush2.bf16.msra.mxu0 0
    %539 = vmatprep.subr.bf16.mxu0 0
    %540 = vmatpush2.bf16.msra.mxu0 0
    %541 = vmatprep.subr.bf16.mxu0 0
    %542 = vmatpush2.bf16.msra.mxu0 0
    %543 = vmatprep.subr.bf16.mxu0 0
    %544 = vmatpush2.bf16.msra.mxu0 0
    %545 = vmatprep.subr.bf16.mxu0 0
    %546 = vmatpush2.bf16.msra.mxu0 0
    %547 = vmatprep.subr.bf16.mxu0 0
    %548 = vmatpush2.bf16.msra.mxu0 0
    %549 = vmatprep.mubr.bf16.mxu0 0
    %550 = vmatmul.mubr.bf16.gmra.mxu0 %v89
    %v551 = vpop.f32.mrf.mxu0
    %v552 = vadd.f32 %v509, %v551
    %v553 = vpop.f32.mrf.mxu0
    %v554 = vadd.f32 %v511, %v553
    %v555 = vpop.f32.mrf.mxu0
    %v556 = vadd.f32 %v513, %v555
    %v557 = vpop.f32.mrf.mxu0
    %v558 = vadd.f32 %v515, %v557
    %559 = vdwg.mxu0
    %560 = vmatprep.subr.bf16.mxu0 0
    %561 = vmatpush1.bf16.msra.mxu0 0
    %562 = vmatprep.subr.bf16.mxu0 0
    %563 = vmatpush1.bf16.msra.mxu0 0
    %564 = vmatprep.subr.bf16.mxu0 0
    %565 = vmatpush1.bf16.msra.mxu0 0
    %566 = vmatprep.subr.bf16.mxu0 0
    %567 = vmatpush1.bf16.msra.mxu0 0
    %568 = vmatprep.subr.bf16.mxu0 0
    %569 = vmatpush1.bf16.msra.mxu0 0
    %570 = vmatprep.subr.bf16.mxu0 0
    %571 = vmatpush1.bf16.msra.mxu0 0
    %572 = vmatprep.subr.bf16.mxu0 %v235
    %573 = vmatpush1.bf16.msra.mxu0 %v234
    %574 = vmatprep.subr.bf16.mxu0 %v233
    %575 = vmatpush1.bf16.msra.mxu0 %v232
    %576 = vmatprep.subr.bf16.mxu0 0
    %577 = vmatpush2.bf16.msra.mxu0 0
    %578 = vmatprep.subr.bf16.mxu0 0
    %579 = vmatpush2.bf16.msra.mxu0 0
    %580 = vmatprep.subr.bf16.mxu0 0
    %581 = vmatpush2.bf16.msra.mxu0 0
    %582 = vmatprep.subr.bf16.mxu0 0
    %583 = vmatpush2.bf16.msra.mxu0 0
    %584 = vmatprep.subr.bf16.mxu0 0
    %585 = vmatpush2.bf16.msra.mxu0 0
    %586 = vmatprep.subr.bf16.mxu0 0
    %587 = vmatpush2.bf16.msra.mxu0 0
    %588 = vmatprep.subr.bf16.mxu0 0
    %589 = vmatpush2.bf16.msra.mxu0 0
    %590 = vmatprep.subr.bf16.mxu0 0
    %591 = vmatpush2.bf16.msra.mxu0 0
    %592 = vmatprep.mubr.bf16.mxu0 0
    %593 = vmatmul.mubr.bf16.gmra.mxu0 %v326
    %v594 = vpop.f32.mrf.mxu0
    %v595 = vadd.f32 0.0, %v594
    %v596 = vpop.f32.mrf.mxu0
    %v597 = vadd.f32 0.0, %v596
    %v598 = vpop.f32.mrf.mxu0
    %v599 = vadd.f32 0.0, %v598
    %v600 = vpop.f32.mrf.mxu0
    %v601 = vadd.f32 0.0, %v600
    %602 = vdwg.mxu0
    %v603 = vadd.f32 %v552, %v595
    %v604 = vadd.f32 %v554, %v597
    %v605 = vadd.f32 %v556, %v599
    %v606 = vadd.f32 %v558, %v601
    %607 = vmatprep.subr.bf16.mxu0 0
    %608 = vmatpush1.bf16.msra.mxu0 0
    %609 = vmatprep.subr.bf16.mxu0 0
    %610 = vmatpush1.bf16.msra.mxu0 0
    %611 = vmatprep.subr.bf16.mxu0 0
    %612 = vmatpush1.bf16.msra.mxu0 0
    %613 = vmatprep.subr.bf16.mxu0 0
    %614 = vmatpush1.bf16.msra.mxu0 0
    %615 = vmatprep.subr.bf16.mxu0 0
    %616 = vmatpush1.bf16.msra.mxu0 0
    %617 = vmatprep.subr.bf16.mxu0 0
    %618 = vmatpush1.bf16.msra.mxu0 0
    %619 = vmatprep.subr.bf16.mxu0 %v320
    %620 = vmatpush1.bf16.msra.mxu0 %v319
    %621 = vmatprep.subr.bf16.mxu0 %v318
    %622 = vmatpush1.bf16.msra.mxu0 %v317
    %623 = vmatprep.subr.bf16.mxu0 0
    %624 = vmatpush2.bf16.msra.mxu0 0
    %625 = vmatprep.subr.bf16.mxu0 0
    %626 = vmatpush2.bf16.msra.mxu0 0
    %627 = vmatprep.subr.bf16.mxu0 0
    %628 = vmatpush2.bf16.msra.mxu0 0
    %629 = vmatprep.subr.bf16.mxu0 0
    %630 = vmatpush2.bf16.msra.mxu0 0
    %631 = vmatprep.subr.bf16.mxu0 0
    %632 = vmatpush2.bf16.msra.mxu0 0
    %633 = vmatprep.subr.bf16.mxu0 0
    %634 = vmatpush2.bf16.msra.mxu0 0
    %635 = vmatprep.subr.bf16.mxu0 0
    %636 = vmatpush2.bf16.msra.mxu0 0
    %637 = vmatprep.subr.bf16.mxu0 0
    %638 = vmatpush2.bf16.msra.mxu0 0
    %639 = vmatprep.mubr.bf16.mxu0 0
    %640 = vmatmul.mubr.bf16.gmra.mxu0 %v405
    %v641 = vpop.f32.mrf.mxu0
    %v642 = vadd.f32 0.0, %v641
    %v643 = vpop.f32.mrf.mxu0
    %v644 = vadd.f32 0.0, %v643
    %v645 = vpop.f32.mrf.mxu0
    %v646 = vadd.f32 0.0, %v645
    %v647 = vpop.f32.mrf.mxu0
    %v648 = vadd.f32 0.0, %v647
    %649 = vdwg.mxu0
    %v650 = vadd.f32 %v603, %v642
    %v651 = vadd.f32 %v604, %v644
    %v652 = vadd.f32 %v605, %v646
    %v653 = vadd.f32 %v606, %v648
    %v654 = vld [vmem:[%s0 + $0x8] sm:$0xe]
    %v656 = vunpack.c.l.b16 %v654
    %v657 = vpack.c.b16 %v296, %v656
    %v658 = vrot.slane %v657, 1
    %v660 = vsel %vm87, %v658, 0
    %662 = vmatprep.subr.bf16.mxu0 0
    %663 = vmatpush1.bf16.msra.mxu0 0
    %664 = vmatprep.subr.bf16.mxu0 0
    %665 = vmatpush1.bf16.msra.mxu0 0
    %666 = vmatprep.subr.bf16.mxu0 0
    %667 = vmatpush1.bf16.msra.mxu0 0
    %668 = vmatprep.subr.bf16.mxu0 0
    %669 = vmatpush1.bf16.msra.mxu0 0
    %670 = vmatprep.subr.bf16.mxu0 0
    %671 = vmatpush1.bf16.msra.mxu0 0
    %672 = vmatprep.subr.bf16.mxu0 0
    %673 = vmatpush1.bf16.msra.mxu0 0
    %674 = vmatprep.subr.bf16.mxu0 %v399
    %675 = vmatpush1.bf16.msra.mxu0 %v398
    %676 = vmatprep.subr.bf16.mxu0 %v397
    %677 = vmatpush1.bf16.msra.mxu0 %v396
    %678 = vmatprep.subr.bf16.mxu0 0
    %679 = vmatpush2.bf16.msra.mxu0 0
    %680 = vmatprep.subr.bf16.mxu0 0
    %681 = vmatpush2.bf16.msra.mxu0 0
    %682 = vmatprep.subr.bf16.mxu0 0
    %683 = vmatpush2.bf16.msra.mxu0 0
    %684 = vmatprep.subr.bf16.mxu0 0
    %685 = vmatpush2.bf16.msra.mxu0 0
    %686 = vmatprep.subr.bf16.mxu0 0
    %687 = vmatpush2.bf16.msra.mxu0 0
    %688 = vmatprep.subr.bf16.mxu0 0
    %689 = vmatpush2.bf16.msra.mxu0 0
    %690 = vmatprep.subr.bf16.mxu0 0
    %691 = vmatpush2.bf16.msra.mxu0 0
    %692 = vmatprep.subr.bf16.mxu0 0
    %693 = vmatpush2.bf16.msra.mxu0 0
    %694 = vmatprep.mubr.bf16.mxu0 0
    %695 = vmatmul.mubr.bf16.gmra.mxu0 %v660
    %v696 = vpop.f32.mrf.mxu0
    %v697 = vadd.f32 0.0, %v696
    %v698 = vpop.f32.mrf.mxu0
    %v699 = vadd.f32 0.0, %v698
    %v700 = vpop.f32.mrf.mxu0
    %v701 = vadd.f32 0.0, %v700
    %v702 = vpop.f32.mrf.mxu0
    %v703 = vadd.f32 0.0, %v702
    %704 = vdwg.mxu0
    %v705 = vadd.f32 %v650, %v697
    %v706 = vadd.f32 %v651, %v699
    %v707 = vadd.f32 %v652, %v701
    %v708 = vadd.f32 %v653, %v703
    %v709 = vadd.f32 %v705, %v459
    %v710 = vadd.f32 %v706, %v463
    %v711 = vadd.f32 %v707, %v459
    %v712 = vadd.f32 %v708, %v463
    %v713 = vmax.f32 %v709, 0.0
    %v714 = vmax.f32 %v710, 0.0
    %v715 = vmax.f32 %v711, 0.0
    %v716 = vmax.f32 %v712, 0.0
    %v717 = vmax.f32 %v470, %v713
    %v718 = vmax.f32 %v471, %v714
    %v719 = vmax.f32 %v472, %v715
    %v720 = vmax.f32 %v473, %v716
    %725 = vrot.lane.b32.xlu0 %v717, 122
    %v726 = vpop.permute.xlu0 %725
    %727 = vrot.lane.b32.xlu0 %v718, 122
    %v728 = vpop.permute.xlu0 %727
    %729 = vrot.lane.b32.xlu0 %v719, 122
    %v730 = vpop.permute.xlu0 %729
    %731 = vrot.lane.b32.xlu0 %v720, 122
    %v732 = vpop.permute.xlu0 %731
    %vm733 = vcmask 998400
    %v734 = vsel %vm733, %v726, %v728
    %v735 = vsel %vm733, %v730, %v732
    %v740 = vmax.f32 %v717, %v734
    %v741 = vmax.f32 %v718, %v728
    %v742 = vmax.f32 %v719, %v735
    %v743 = vmax.f32 %v720, %v732
    %v744 = vpack.c.bf16 %v742, %v740
    %v745 = vpack.c.bf16 %v743, %v741
    %v746 = vld [vmem:[%s3] sm:$0xff]
    %v747 = vld [vmem:[%s3 + $0x8] sm:$0xff]
    %v748 = vld [vmem:[%s3 + $0x10] sm:$0xf]
    %v749 = vld [vmem:[%s3 + $0x14] sm:$0xff]
    %v750 = vld [vmem:[%s3 + $0x1c] sm:$0xff]
    %v751 = vld [vmem:[%s3 + $0x24] sm:$0xf]
    %v752 = vld [vmem:[%s3 + $0x28] sm:$0xff]
    %v753 = vld [vmem:[%s3 + $0x30] sm:$0xff]
    %v754 = vld [vmem:[%s3 + $0x38] sm:$0xf]
    %v755 = vld [vmem:[%s3 + $0x3c] sm:$0xff]
    %v756 = vld [vmem:[%s3 + $0x44] sm:$0xff]
    %v757 = vld [vmem:[%s3 + $0x4c] sm:$0xf]
    %v758 = vld [vmem:[%s3 + $0x50] sm:$0xff]
    %v759 = vld [vmem:[%s3 + $0x58] sm:$0xff]
    %v760 = vld [vmem:[%s3 + $0x60] sm:$0xf]
    %v761 = vld [vmem:[%s3 + $0x64] sm:$0xff]
    %v762 = vld [vmem:[%s3 + $0x6c] sm:$0xff]
    %v763 = vld [vmem:[%s3 + $0x74] sm:$0xf]
    %v764 = vld [vmem:[%s3 + $0x78] sm:$0xff]
    %v765 = vld [vmem:[%s3 + $0x80] sm:$0xff]
    %v766 = vld [vmem:[%s3 + $0x88] sm:$0xf]
    %v767 = vld [vmem:[%s3 + $0x8c] sm:$0xff]
    %v768 = vld [vmem:[%s3 + $0x94] sm:$0xff]
    %v769 = vld [vmem:[%s3 + $0x9c] sm:$0xf]
    %v770 = vld [vmem:[%s3 + $0xa0] sm:$0xff]
    %v771 = vld [vmem:[%s3 + $0xa8] sm:$0xff]
    %v772 = vld [vmem:[%s3 + $0xb0] sm:$0xf]
    %v773 = vld [vmem:[%s3 + $0xb4] sm:$0xff]
    %v774 = vld [vmem:[%s3 + $0xbc] sm:$0xff]
    %v775 = vld [vmem:[%s3 + $0xc4] sm:$0xf]
    %v776 = vld [vmem:[%s3 + $0xc8] sm:$0xff]
    %v777 = vld [vmem:[%s3 + $0xd0] sm:$0xff]
    %v778 = vld [vmem:[%s3 + $0xd8] sm:$0xf]
    %v779 = vld [vmem:[%s3 + $0xdc] sm:$0xff]
    %v780 = vld [vmem:[%s3 + $0xe4] sm:$0xff]
    %v781 = vld [vmem:[%s3 + $0xec] sm:$0xf]
    %v782 = vld [vmem:[%s3 + $0xf0] sm:$0xff]
    %v783 = vld [vmem:[%s3 + $0xf8] sm:$0xff]
    %v784 = vld [vmem:[%s3 + $0x100] sm:$0xf]
    %v785 = vld [vmem:[%s3 + $0x104] sm:$0xff]
    %v786 = vld [vmem:[%s3 + $0x10c] sm:$0xff]
    %v787 = vld [vmem:[%s3 + $0x114] sm:$0xf]
    %v788 = vld [vmem:[%s3 + $0x118] sm:$0xff]
    %v789 = vld [vmem:[%s3 + $0x120] sm:$0xff]
    %v790 = vld [vmem:[%s3 + $0x128] sm:$0xf]
    %v791 = vld [vmem:[%s3 + $0x12c] sm:$0xff]
    %v792 = vld [vmem:[%s3 + $0x134] sm:$0xff]
    %v793 = vld [vmem:[%s3 + $0x13c] sm:$0xf]
    %v794 = vld [vmem:[%s3 + $0x140] sm:$0xff]
    %v795 = vld [vmem:[%s3 + $0x148] sm:$0xff]
    %v796 = vld [vmem:[%s3 + $0x150] sm:$0xf]
    %v797 = vld [vmem:[%s3 + $0x154] sm:$0xff]
    %v798 = vld [vmem:[%s3 + $0x15c] sm:$0xff]
    %v799 = vld [vmem:[%s3 + $0x164] sm:$0xf]
    %v854 = vunpack.c.l.b16 %v746
    %v855 = vunpack.c.h.b16 %v746
    %v856 = vunpack.c.l.b16 %v747
    %v857 = vunpack.c.h.b16 %v747
    %v858 = vunpack.c.l.b16 %v748
    %v859 = vunpack.c.l.b16 %v749
    %v860 = vunpack.c.h.b16 %v749
    %v861 = vunpack.c.l.b16 %v750
    %v862 = vunpack.c.h.b16 %v750
    %v863 = vunpack.c.l.b16 %v751
    %v864 = vunpack.c.l.b16 %v752
    %v865 = vunpack.c.h.b16 %v752
    %v866 = vunpack.c.l.b16 %v753
    %v867 = vunpack.c.h.b16 %v753
    %v868 = vunpack.c.l.b16 %v754
    %v869 = vunpack.c.l.b16 %v755
    %v870 = vunpack.c.h.b16 %v755
    %v871 = vunpack.c.l.b16 %v756
    %v872 = vunpack.c.h.b16 %v756
    %v873 = vunpack.c.l.b16 %v757
    %v874 = vunpack.c.l.b16 %v758
    %v875 = vunpack.c.h.b16 %v758
    %v876 = vunpack.c.l.b16 %v759
    %v877 = vunpack.c.h.b16 %v759
    %v878 = vunpack.c.l.b16 %v760
    %v879 = vunpack.c.l.b16 %v761
    %v880 = vunpack.c.h.b16 %v761
    %v881 = vunpack.c.l.b16 %v762
    %v882 = vunpack.c.h.b16 %v762
    %v883 = vunpack.c.l.b16 %v763
    %v884 = vunpack.c.l.b16 %v764
    %v885 = vunpack.c.h.b16 %v764
    %v886 = vunpack.c.l.b16 %v765
    %v887 = vunpack.c.h.b16 %v765
    %v888 = vunpack.c.l.b16 %v766
    %v889 = vunpack.c.l.b16 %v767
    %v890 = vunpack.c.h.b16 %v767
    %v891 = vunpack.c.l.b16 %v768
    %v892 = vunpack.c.h.b16 %v768
    %v893 = vunpack.c.l.b16 %v769
    %v894 = vunpack.c.l.b16 %v770
    %v895 = vunpack.c.h.b16 %v770
    %v896 = vunpack.c.l.b16 %v771
    %v897 = vunpack.c.h.b16 %v771
    %v898 = vunpack.c.l.b16 %v772
    %v899 = vunpack.c.l.b16 %v773
    %v900 = vunpack.c.h.b16 %v773
    %v901 = vunpack.c.l.b16 %v774
    %v902 = vunpack.c.h.b16 %v774
    %v903 = vunpack.c.l.b16 %v775
    %v904 = vunpack.c.l.b16 %v776
    %v905 = vunpack.c.h.b16 %v776
    %v906 = vunpack.c.l.b16 %v777
    %v907 = vunpack.c.h.b16 %v777
    %v908 = vunpack.c.l.b16 %v778
    %v909 = vunpack.c.l.b16 %v779
    %v910 = vunpack.c.h.b16 %v779
    %v911 = vunpack.c.l.b16 %v780
    %v912 = vunpack.c.h.b16 %v780
    %v913 = vunpack.c.l.b16 %v781
    %v914 = vunpack.c.l.b16 %v782
    %v915 = vunpack.c.h.b16 %v782
    %v916 = vunpack.c.l.b16 %v783
    %v917 = vunpack.c.h.b16 %v783
    %v918 = vunpack.c.l.b16 %v784
    %v919 = vunpack.c.l.b16 %v785
    %v920 = vunpack.c.h.b16 %v785
    %v921 = vunpack.c.l.b16 %v786
    %v922 = vunpack.c.h.b16 %v786
    %v923 = vunpack.c.l.b16 %v787
    %v924 = vunpack.c.l.b16 %v788
    %v925 = vunpack.c.h.b16 %v788
    %v926 = vunpack.c.l.b16 %v789
    %v927 = vunpack.c.h.b16 %v789
    %v928 = vunpack.c.l.b16 %v790
    %v929 = vunpack.c.l.b16 %v791
    %v930 = vunpack.c.h.b16 %v791
    %v931 = vunpack.c.l.b16 %v792
    %v932 = vunpack.c.h.b16 %v792
    %v933 = vunpack.c.l.b16 %v793
    %v934 = vunpack.c.l.b16 %v794
    %v935 = vunpack.c.h.b16 %v794
    %v936 = vunpack.c.l.b16 %v795
    %v937 = vunpack.c.h.b16 %v795
    %v938 = vunpack.c.l.b16 %v796
    %v939 = vunpack.c.l.b16 %v797
    %v940 = vunpack.c.h.b16 %v797
    %v941 = vunpack.c.l.b16 %v798
    %v942 = vunpack.c.h.b16 %v798
    %v943 = vunpack.c.l.b16 %v799
    %v944 = vpack.c.b16 %v859, %v854
    %v945 = vpack.c.b16 %v860, %v855
    %v946 = vpack.c.b16 %v861, %v856
    %v947 = vpack.c.b16 %v862, %v857
    %v948 = vpack.c.b16 %v863, %v858
    %v949 = vpack.c.b16 %v869, %v864
    %v950 = vpack.c.b16 %v870, %v865
    %v951 = vpack.c.b16 %v871, %v866
    %v952 = vpack.c.b16 %v872, %v867
    %v953 = vpack.c.b16 %v873, %v868
    %v954 = vpack.c.b16 %v879, %v874
    %v955 = vpack.c.b16 %v880, %v875
    %v956 = vpack.c.b16 %v881, %v876
    %v957 = vpack.c.b16 %v882, %v877
    %v958 = vpack.c.b16 %v883, %v878
    %v959 = vpack.c.b16 %v889, %v884
    %v960 = vpack.c.b16 %v890, %v885
    %v961 = vpack.c.b16 %v891, %v886
    %v962 = vpack.c.b16 %v892, %v887
    %v963 = vpack.c.b16 %v893, %v888
    %v964 = vpack.c.b16 %v899, %v894
    %v965 = vpack.c.b16 %v900, %v895
    %v966 = vpack.c.b16 %v901, %v896
    %v967 = vpack.c.b16 %v902, %v897
    %v968 = vpack.c.b16 %v903, %v898
    %v969 = vpack.c.b16 %v909, %v904
    %v970 = vpack.c.b16 %v910, %v905
    %v971 = vpack.c.b16 %v911, %v906
    %v972 = vpack.c.b16 %v912, %v907
    %v973 = vpack.c.b16 %v913, %v908
    %v974 = vpack.c.b16 %v919, %v914
    %v975 = vpack.c.b16 %v920, %v915
    %v976 = vpack.c.b16 %v921, %v916
    %v977 = vpack.c.b16 %v922, %v917
    %v978 = vpack.c.b16 %v923, %v918
    %v979 = vpack.c.b16 %v929, %v924
    %v980 = vpack.c.b16 %v930, %v925
    %v981 = vpack.c.b16 %v931, %v926
    %v982 = vpack.c.b16 %v932, %v927
    %v983 = vpack.c.b16 %v933, %v928
    %v984 = vpack.c.b16 %v939, %v934
    %v985 = vpack.c.b16 %v940, %v935
    %v986 = vpack.c.b16 %v941, %v936
    %v987 = vpack.c.b16 %v942, %v937
    %v988 = vpack.c.b16 %v943, %v938
    %vm1034 = vcmask 130048
    %v1036 = vsel %vm1034, %v745, 0
    %1038 = vmatprep.subr.bf16.mxu0 %v980
    %1039 = vmatpush1.bf16.msra.mxu0 %v979
    %1040 = vmatprep.subr.bf16.mxu0 %v975
    %1041 = vmatpush1.bf16.msra.mxu0 %v974
    %1042 = vmatprep.subr.bf16.mxu0 %v970
    %1043 = vmatpush1.bf16.msra.mxu0 %v969
    %1044 = vmatprep.subr.bf16.mxu0 %v965
    %1045 = vmatpush1.bf16.msra.mxu0 %v964
    %1046 = vmatprep.subr.bf16.mxu0 %v960
    %1047 = vmatpush1.bf16.msra.mxu0 %v959
    %1048 = vmatprep.subr.bf16.mxu0 %v955
    %1049 = vmatpush1.bf16.msra.mxu0 %v954
    %1050 = vmatprep.subr.bf16.mxu0 %v950
    %1051 = vmatpush1.bf16.msra.mxu0 %v949
    %1052 = vmatprep.subr.bf16.mxu0 %v945
    %1053 = vmatpush1.bf16.msra.mxu0 %v944
    %1054 = vmatprep.subr.bf16.mxu0 0
    %1055 = vmatpush2.bf16.msra.mxu0 0
    %1056 = vmatprep.subr.bf16.mxu0 0
    %1057 = vmatpush2.bf16.msra.mxu0 0
    %1058 = vmatprep.subr.bf16.mxu0 0
    %1059 = vmatpush2.bf16.msra.mxu0 0
    %1060 = vmatprep.subr.bf16.mxu0 0
    %1061 = vmatpush2.bf16.msra.mxu0 0
    %1062 = vmatprep.subr.bf16.mxu0 0
    %1063 = vmatpush2.bf16.msra.mxu0 0
    %1064 = vmatprep.subr.bf16.mxu0 0
    %1065 = vmatpush2.bf16.msra.mxu0 0
    %1066 = vmatprep.subr.bf16.mxu0 0
    %1067 = vmatpush2.bf16.msra.mxu0 0
    %1068 = vmatprep.subr.bf16.mxu0 %v985
    %1069 = vmatpush2.bf16.msra.mxu0 %v984
    %1070 = vmatprep.mubr.bf16.mxu0 %v1036
    %1071 = vmatmul.mubr.bf16.gmra.mxu0 %v744
    %v1072 = vpop.f32.mrf.mxu0
    %v1073 = vadd.f32 0.0, %v1072
    %v1074 = vpop.f32.mrf.mxu0
    %v1075 = vadd.f32 0.0, %v1074
    %v1076 = vpop.f32.mrf.mxu0
    %v1077 = vpop.f32.mrf.mxu0
    %v1078 = vadd.f32 0.0, %v1077
    %1079 = vdwg.mxu0
    %1080 = vmatprep.subr.bf16.mxu0 %v982
    %1081 = vmatpush1.bf16.msra.mxu0 %v981
    %1082 = vmatprep.subr.bf16.mxu0 %v977
    %1083 = vmatpush1.bf16.msra.mxu0 %v976
    %1084 = vmatprep.subr.bf16.mxu0 %v972
    %1085 = vmatpush1.bf16.msra.mxu0 %v971
    %1086 = vmatprep.subr.bf16.mxu0 %v967
    %1087 = vmatpush1.bf16.msra.mxu0 %v966
    %1088 = vmatprep.subr.bf16.mxu0 %v962
    %1089 = vmatpush1.bf16.msra.mxu0 %v961
    %1090 = vmatprep.subr.bf16.mxu0 %v957
    %1091 = vmatpush1.bf16.msra.mxu0 %v956
    %1092 = vmatprep.subr.bf16.mxu0 %v952
    %1093 = vmatpush1.bf16.msra.mxu0 %v951
    %1094 = vmatprep.subr.bf16.mxu0 %v947
    %1095 = vmatpush1.bf16.msra.mxu0 %v946
    %1096 = vmatprep.subr.bf16.mxu0 0
    %1097 = vmatpush2.bf16.msra.mxu0 0
    %1098 = vmatprep.subr.bf16.mxu0 0
    %1099 = vmatpush2.bf16.msra.mxu0 0
    %1100 = vmatprep.subr.bf16.mxu0 0
    %1101 = vmatpush2.bf16.msra.mxu0 0
    %1102 = vmatprep.subr.bf16.mxu0 0
    %1103 = vmatpush2.bf16.msra.mxu0 0
    %1104 = vmatprep.subr.bf16.mxu0 0
    %1105 = vmatpush2.bf16.msra.mxu0 0
    %1106 = vmatprep.subr.bf16.mxu0 0
    %1107 = vmatpush2.bf16.msra.mxu0 0
    %1108 = vmatprep.subr.bf16.mxu0 0
    %1109 = vmatpush2.bf16.msra.mxu0 0
    %1110 = vmatprep.subr.bf16.mxu0 %v987
    %1111 = vmatpush2.bf16.msra.mxu0 %v986
    %1112 = vmatprep.mubr.bf16.mxu0 %v1036
    %1113 = vmatmul.mubr.bf16.gmra.mxu0 %v744
    %v1114 = vpop.f32.mrf.mxu0
    %v1115 = vadd.f32 0.0, %v1114
    %v1116 = vpop.f32.mrf.mxu0
    %v1117 = vadd.f32 0.0, %v1116
    %v1118 = vpop.f32.mrf.mxu0
    %v1119 = vadd.f32 0.0, %v1118
    %v1120 = vpop.f32.mrf.mxu0
    %v1121 = vadd.f32 0.0, %v1120
    %1122 = vdwg.mxu0
    %1123 = vmatprep.subr.bf16.mxu0 0
    %1124 = vmatpush1.bf16.msra.mxu0 %v983
    %1125 = vmatprep.subr.bf16.mxu0 0
    %1126 = vmatpush1.bf16.msra.mxu0 %v978
    %1127 = vmatprep.subr.bf16.mxu0 0
    %1128 = vmatpush1.bf16.msra.mxu0 %v973
    %1129 = vmatprep.subr.bf16.mxu0 0
    %1130 = vmatpush1.bf16.msra.mxu0 %v968
    %1131 = vmatprep.subr.bf16.mxu0 0
    %1132 = vmatpush1.bf16.msra.mxu0 %v963
    %1133 = vmatprep.subr.bf16.mxu0 0
    %1134 = vmatpush1.bf16.msra.mxu0 %v958
    %1135 = vmatprep.subr.bf16.mxu0 0
    %1136 = vmatpush1.bf16.msra.mxu0 %v953
    %1137 = vmatprep.subr.bf16.mxu0 0
    %1138 = vmatpush1.bf16.msra.mxu0 %v948
    %1139 = vmatprep.subr.bf16.mxu0 0
    %1140 = vmatpush2.bf16.msra.mxu0 0
    %1141 = vmatprep.subr.bf16.mxu0 0
    %1142 = vmatpush2.bf16.msra.mxu0 0
    %1143 = vmatprep.subr.bf16.mxu0 0
    %1144 = vmatpush2.bf16.msra.mxu0 0
    %1145 = vmatprep.subr.bf16.mxu0 0
    %1146 = vmatpush2.bf16.msra.mxu0 0
    %1147 = vmatprep.subr.bf16.mxu0 0
    %1148 = vmatpush2.bf16.msra.mxu0 0
    %1149 = vmatprep.subr.bf16.mxu0 0
    %1150 = vmatpush2.bf16.msra.mxu0 0
    %1151 = vmatprep.subr.bf16.mxu0 0
    %1152 = vmatpush2.bf16.msra.mxu0 0
    %1153 = vmatprep.subr.bf16.mxu0 0
    %1154 = vmatpush2.bf16.msra.mxu0 %v988
    %1155 = vmatprep.mubr.bf16.mxu0 %v1036
    %1156 = vmatmul.mubr.bf16.gmra.mxu0 %v744
    %v1157 = vpop.f32.mrf.mxu0
    %v1158 = vadd.f32 0.0, %v1157
    %v1159 = vpop.f32.mrf.mxu0
    %v1160 = vpop.f32.mrf.mxu0
    %v1161 = vadd.f32 0.0, %v1160
    %v1162 = vpop.f32.mrf.mxu0
    %1163 = vdwg.mxu0
    %vm1166 = vcmask 1046528
    %v1167 = vrot.slane %v1075, 1
    %v1168 = vrot.slane %v1078, 1
    %v1169 = vsel %vm1166, %v1167, %v1168
    %v1171 = vadd.f32 %v1073, %v1169
    %v1174 = vrot.slane %v1117, 1
    %v1175 = vrot.slane %v1121, 1
    %v1176 = vsel %vm1166, %v1174, %v1175
    %v1179 = vadd.f32 %v1115, %v1176
    %v1180 = vadd.f32 %v1119, %v1175
    %vm1183 = vcmask 1045504
    %v1184 = vrot.slane %v1179, 2
    %v1185 = vrot.slane %v1180, 2
    %v1186 = vsel %vm1183, %v1184, %v1185
    %v1188 = vadd.f32 %v1171, %v1186
    %vm1191 = vcmask 1043456
    %v1192 = vrot.slane %v1158, 4
    %v1193 = vrot.slane %v1161, 4
    %v1194 = vsel %vm1191, %v1192, %v1193
    %v1196 = vadd.f32 %v1188, %v1194
    %v1197 = vld [vmem:[%s4] sm:$0x1]
    %v1199 = vlaneseq
    %v1200 = vshrl.u32 %v1199, 7
    %v1201 = vsub.s32 0, %v1200
    %v1202 = vrot.slane %v1197, %v1201
    %v1204 = vadd.f32 %v1196, %v1202
    %v1205 = vmax.f32 %v1204, 0.0
    %v1207 = vrot.slane %v1205, 1
    %v1209 = vmax.f32 %v1205, %v1207
    %1211 = vrot.lane.b32.xlu0 %v1209, 112
    %v1212 = vpop.permute.xlu0 %1211
    %v1214 = vmax.f32 %v1209, %v1212
    %v1215 = vld [vmem:[%s6] sm:$0x1]
    %v1216 = vpack.c.bf16 %v1214, %v1214
    %v1217 = vld [vmem:[%s5] sm:$0xf]
    %v1218 = vld [vmem:[%s5 + $0x4] sm:$0xf]
    %v1219 = vld [vmem:[%s5 + $0x8] sm:$0xf]
    %v1220 = vld [vmem:[%s5 + $0xc] sm:$0xf]
    %v1221 = vld [vmem:[%s5 + $0x10] sm:$0xf]
    %v1222 = vld [vmem:[%s5 + $0x14] sm:$0xf]
    %v1223 = vld [vmem:[%s5 + $0x18] sm:$0xf]
    %v1224 = vld [vmem:[%s5 + $0x1c] sm:$0xf]
    %v1225 = vld [vmem:[%s5 + $0x20] sm:$0xf]
    %v1226 = vld [vmem:[%s5 + $0x24] sm:$0xf]
    %v1227 = vld [vmem:[%s5 + $0x28] sm:$0xf]
    %v1228 = vld [vmem:[%s5 + $0x2c] sm:$0xf]
    %v1229 = vld [vmem:[%s5 + $0x30] sm:$0xf]
    %v1230 = vld [vmem:[%s5 + $0x34] sm:$0xf]
    %v1245 = vunpack.c.l.b16 %v1217
    %v1246 = vunpack.c.l.b16 %v1218
    %v1247 = vunpack.c.l.b16 %v1219
    %v1248 = vunpack.c.l.b16 %v1220
    %v1249 = vunpack.c.l.b16 %v1221
    %v1250 = vunpack.c.l.b16 %v1222
    %v1251 = vunpack.c.l.b16 %v1223
    %v1252 = vunpack.c.l.b16 %v1224
    %v1253 = vunpack.c.l.b16 %v1225
    %v1254 = vunpack.c.l.b16 %v1226
    %v1255 = vunpack.c.l.b16 %v1227
    %v1256 = vunpack.c.l.b16 %v1228
    %v1257 = vunpack.c.l.b16 %v1229
    %v1258 = vunpack.c.l.b16 %v1230
    %v1259 = vpack.c.b16 %v1246, %v1245
    %v1260 = vpack.c.b16 %v1248, %v1247
    %v1261 = vpack.c.b16 %v1250, %v1249
    %v1262 = vpack.c.b16 %v1252, %v1251
    %v1263 = vpack.c.b16 %v1254, %v1253
    %v1264 = vpack.c.b16 %v1256, %v1255
    %v1265 = vpack.c.b16 %v1258, %v1257
    %vm1273 = vcmask 916480
    %v1275 = vsel %vm1273, %v1216, 0
    %1277 = vmatprep.subr.bf16.mxu0 0
    %1278 = vmatpush1.bf16.msra.mxu0 0
    %1279 = vmatprep.subr.bf16.mxu0 0
    %1280 = vmatpush1.bf16.msra.mxu0 %v1265
    %1281 = vmatprep.subr.bf16.mxu0 0
    %1282 = vmatpush1.bf16.msra.mxu0 %v1264
    %1283 = vmatprep.subr.bf16.mxu0 0
    %1284 = vmatpush1.bf16.msra.mxu0 %v1263
    %1285 = vmatprep.subr.bf16.mxu0 0
    %1286 = vmatpush1.bf16.msra.mxu0 %v1262
    %1287 = vmatprep.subr.bf16.mxu0 0
    %1288 = vmatpush1.bf16.msra.mxu0 %v1261
    %1289 = vmatprep.subr.bf16.mxu0 0
    %1290 = vmatpush1.bf16.msra.mxu0 %v1260
    %1291 = vmatprep.subr.bf16.mxu0 0
    %1292 = vmatpush1.bf16.msra.mxu0 %v1259
    %1293 = vmatprep.subr.bf16.mxu0 0
    %1294 = vmatpush2.bf16.msra.mxu0 0
    %1295 = vmatprep.subr.bf16.mxu0 0
    %1296 = vmatpush2.bf16.msra.mxu0 0
    %1297 = vmatprep.subr.bf16.mxu0 0
    %1298 = vmatpush2.bf16.msra.mxu0 0
    %1299 = vmatprep.subr.bf16.mxu0 0
    %1300 = vmatpush2.bf16.msra.mxu0 0
    %1301 = vmatprep.subr.bf16.mxu0 0
    %1302 = vmatpush2.bf16.msra.mxu0 0
    %1303 = vmatprep.subr.bf16.mxu0 0
    %1304 = vmatpush2.bf16.msra.mxu0 0
    %1305 = vmatprep.subr.bf16.mxu0 0
    %1306 = vmatpush2.bf16.msra.mxu0 0
    %1307 = vmatprep.subr.bf16.mxu0 0
    %1308 = vmatpush2.bf16.msra.mxu0 0
    %1309 = vmatprep.mubr.bf16.mxu0 0
    %1310 = vmatmul.mubr.bf16.gmra.mxu0 %v1275
    %v1311 = vpop.f32.mrf.mxu0
    %v1312 = vadd.f32 0.0, %v1311
    %v1313 = vpop.f32.mrf.mxu0
    %v1314 = vpop.f32.mrf.mxu0
    %v1315 = vpop.f32.mrf.mxu0
    %1316 = vdwg.mxu0
    %v1317 = vadd.f32 %v1215, %v1312
    %v1318 = vld [vmem:[%s5 + $0x38] sm:$0xf]
    %v1319 = vld [vmem:[%s5 + $0x3c] sm:$0xf]
    %v1320 = vld [vmem:[%s5 + $0x40] sm:$0xf]
    %v1321 = vld [vmem:[%s5 + $0x44] sm:$0xf]
    %v1322 = vld [vmem:[%s5 + $0x48] sm:$0xf]
    %v1323 = vld [vmem:[%s5 + $0x4c] sm:$0xf]
    %v1324 = vld [vmem:[%s5 + $0x50] sm:$0xf]
    %v1325 = vld [vmem:[%s5 + $0x54] sm:$0xf]
    %v1326 = vld [vmem:[%s5 + $0x58] sm:$0xf]
    %v1327 = vld [vmem:[%s5 + $0x5c] sm:$0xf]
    %v1328 = vld [vmem:[%s5 + $0x60] sm:$0xf]
    %v1329 = vld [vmem:[%s5 + $0x64] sm:$0xf]
    %v1330 = vld [vmem:[%s5 + $0x68] sm:$0xf]
    %v1331 = vld [vmem:[%s5 + $0x6c] sm:$0xf]
    %v1333 = vrot.slane %v1216, 1
    %v1348 = vunpack.c.l.b16 %v1318
    %v1349 = vunpack.c.l.b16 %v1319
    %v1350 = vunpack.c.l.b16 %v1320
    %v1351 = vunpack.c.l.b16 %v1321
    %v1352 = vunpack.c.l.b16 %v1322
    %v1353 = vunpack.c.l.b16 %v1323
    %v1354 = vunpack.c.l.b16 %v1324
    %v1355 = vunpack.c.l.b16 %v1325
    %v1356 = vunpack.c.l.b16 %v1326
    %v1357 = vunpack.c.l.b16 %v1327
    %v1358 = vunpack.c.l.b16 %v1328
    %v1359 = vunpack.c.l.b16 %v1329
    %v1360 = vunpack.c.l.b16 %v1330
    %v1361 = vunpack.c.l.b16 %v1331
    %v1362 = vpack.c.b16 %v1349, %v1348
    %v1363 = vpack.c.b16 %v1351, %v1350
    %v1364 = vpack.c.b16 %v1353, %v1352
    %v1365 = vpack.c.b16 %v1355, %v1354
    %v1366 = vpack.c.b16 %v1357, %v1356
    %v1367 = vpack.c.b16 %v1359, %v1358
    %v1368 = vpack.c.b16 %v1361, %v1360
    %v1377 = vsel %vm1273, %v1333, 0
    %1379 = vmatprep.subr.bf16.mxu0 0
    %1380 = vmatpush1.bf16.msra.mxu0 0
    %1381 = vmatprep.subr.bf16.mxu0 0
    %1382 = vmatpush1.bf16.msra.mxu0 %v1368
    %1383 = vmatprep.subr.bf16.mxu0 0
    %1384 = vmatpush1.bf16.msra.mxu0 %v1367
    %1385 = vmatprep.subr.bf16.mxu0 0
    %1386 = vmatpush1.bf16.msra.mxu0 %v1366
    %1387 = vmatprep.subr.bf16.mxu0 0
    %1388 = vmatpush1.bf16.msra.mxu0 %v1365
    %1389 = vmatprep.subr.bf16.mxu0 0
    %1390 = vmatpush1.bf16.msra.mxu0 %v1364
    %1391 = vmatprep.subr.bf16.mxu0 0
    %1392 = vmatpush1.bf16.msra.mxu0 %v1363
    %1393 = vmatprep.subr.bf16.mxu0 0
    %1394 = vmatpush1.bf16.msra.mxu0 %v1362
    %1395 = vmatprep.subr.bf16.mxu0 0
    %1396 = vmatpush2.bf16.msra.mxu0 0
    %1397 = vmatprep.subr.bf16.mxu0 0
    %1398 = vmatpush2.bf16.msra.mxu0 0
    %1399 = vmatprep.subr.bf16.mxu0 0
    %1400 = vmatpush2.bf16.msra.mxu0 0
    %1401 = vmatprep.subr.bf16.mxu0 0
    %1402 = vmatpush2.bf16.msra.mxu0 0
    %1403 = vmatprep.subr.bf16.mxu0 0
    %1404 = vmatpush2.bf16.msra.mxu0 0
    %1405 = vmatprep.subr.bf16.mxu0 0
    %1406 = vmatpush2.bf16.msra.mxu0 0
    %1407 = vmatprep.subr.bf16.mxu0 0
    %1408 = vmatpush2.bf16.msra.mxu0 0
    %1409 = vmatprep.subr.bf16.mxu0 0
    %1410 = vmatpush2.bf16.msra.mxu0 0
    %1411 = vmatprep.mubr.bf16.mxu0 0
    %1412 = vmatmul.mubr.bf16.gmra.mxu0 %v1377
    %v1413 = vpop.f32.mrf.mxu0
    %v1414 = vadd.f32 0.0, %v1413
    %v1415 = vpop.f32.mrf.mxu0
    %v1416 = vpop.f32.mrf.mxu0
    %v1417 = vpop.f32.mrf.mxu0
    %1418 = vdwg.mxu0
    %v1419 = vadd.f32 %v1317, %v1414
    %v1420 = vld [vmem:[%s5 + $0x70] sm:$0xf]
    %v1421 = vld [vmem:[%s5 + $0x74] sm:$0xf]
    %v1422 = vld [vmem:[%s5 + $0x78] sm:$0xf]
    %v1423 = vld [vmem:[%s5 + $0x7c] sm:$0xf]
    %v1424 = vld [vmem:[%s5 + $0x80] sm:$0xf]
    %v1425 = vld [vmem:[%s5 + $0x84] sm:$0xf]
    %v1426 = vld [vmem:[%s5 + $0x88] sm:$0xf]
    %v1427 = vld [vmem:[%s5 + $0x8c] sm:$0xf]
    %v1428 = vld [vmem:[%s5 + $0x90] sm:$0xf]
    %v1429 = vld [vmem:[%s5 + $0x94] sm:$0xf]
    %v1430 = vld [vmem:[%s5 + $0x98] sm:$0xf]
    %v1431 = vld [vmem:[%s5 + $0x9c] sm:$0xf]
    %v1432 = vld [vmem:[%s5 + $0xa0] sm:$0xf]
    %v1433 = vld [vmem:[%s5 + $0xa4] sm:$0xf]
    %v1434 = vrot.slane %v1216, 2
    %v1449 = vunpack.c.l.b16 %v1420
    %v1450 = vunpack.c.l.b16 %v1421
    %v1451 = vunpack.c.l.b16 %v1422
    %v1452 = vunpack.c.l.b16 %v1423
    %v1453 = vunpack.c.l.b16 %v1424
    %v1454 = vunpack.c.l.b16 %v1425
    %v1455 = vunpack.c.l.b16 %v1426
    %v1456 = vunpack.c.l.b16 %v1427
    %v1457 = vunpack.c.l.b16 %v1428
    %v1458 = vunpack.c.l.b16 %v1429
    %v1459 = vunpack.c.l.b16 %v1430
    %v1460 = vunpack.c.l.b16 %v1431
    %v1461 = vunpack.c.l.b16 %v1432
    %v1462 = vunpack.c.l.b16 %v1433
    %v1463 = vpack.c.b16 %v1450, %v1449
    %v1464 = vpack.c.b16 %v1452, %v1451
    %v1465 = vpack.c.b16 %v1454, %v1453
    %v1466 = vpack.c.b16 %v1456, %v1455
    %v1467 = vpack.c.b16 %v1458, %v1457
    %v1468 = vpack.c.b16 %v1460, %v1459
    %v1469 = vpack.c.b16 %v1462, %v1461
    %v1478 = vsel %vm1273, %v1434, 0
    %1480 = vmatprep.subr.bf16.mxu0 0
    %1481 = vmatpush1.bf16.msra.mxu0 0
    %1482 = vmatprep.subr.bf16.mxu0 0
    %1483 = vmatpush1.bf16.msra.mxu0 %v1469
    %1484 = vmatprep.subr.bf16.mxu0 0
    %1485 = vmatpush1.bf16.msra.mxu0 %v1468
    %1486 = vmatprep.subr.bf16.mxu0 0
    %1487 = vmatpush1.bf16.msra.mxu0 %v1467
    %1488 = vmatprep.subr.bf16.mxu0 0
    %1489 = vmatpush1.bf16.msra.mxu0 %v1466
    %1490 = vmatprep.subr.bf16.mxu0 0
    %1491 = vmatpush1.bf16.msra.mxu0 %v1465
    %1492 = vmatprep.subr.bf16.mxu0 0
    %1493 = vmatpush1.bf16.msra.mxu0 %v1464
    %1494 = vmatprep.subr.bf16.mxu0 0
    %1495 = vmatpush1.bf16.msra.mxu0 %v1463
    %1496 = vmatprep.subr.bf16.mxu0 0
    %1497 = vmatpush2.bf16.msra.mxu0 0
    %1498 = vmatprep.subr.bf16.mxu0 0
    %1499 = vmatpush2.bf16.msra.mxu0 0
    %1500 = vmatprep.subr.bf16.mxu0 0
    %1501 = vmatpush2.bf16.msra.mxu0 0
    %1502 = vmatprep.subr.bf16.mxu0 0
    %1503 = vmatpush2.bf16.msra.mxu0 0
    %1504 = vmatprep.subr.bf16.mxu0 0
    %1505 = vmatpush2.bf16.msra.mxu0 0
    %1506 = vmatprep.subr.bf16.mxu0 0
    %1507 = vmatpush2.bf16.msra.mxu0 0
    %1508 = vmatprep.subr.bf16.mxu0 0
    %1509 = vmatpush2.bf16.msra.mxu0 0
    %1510 = vmatprep.subr.bf16.mxu0 0
    %1511 = vmatpush2.bf16.msra.mxu0 0
    %1512 = vmatprep.mubr.bf16.mxu0 0
    %1513 = vmatmul.mubr.bf16.gmra.mxu0 %v1478
    %v1514 = vpop.f32.mrf.mxu0
    %v1515 = vadd.f32 0.0, %v1514
    %v1516 = vpop.f32.mrf.mxu0
    %v1517 = vpop.f32.mrf.mxu0
    %v1518 = vpop.f32.mrf.mxu0
    %1519 = vdwg.mxu0
    %v1520 = vadd.f32 %v1419, %v1515
    %v1521 = vld [vmem:[%s5 + $0xa8] sm:$0xf]
    %v1522 = vld [vmem:[%s5 + $0xac] sm:$0xf]
    %v1523 = vld [vmem:[%s5 + $0xb0] sm:$0xf]
    %v1524 = vld [vmem:[%s5 + $0xb4] sm:$0xf]
    %v1525 = vld [vmem:[%s5 + $0xb8] sm:$0xf]
    %v1526 = vld [vmem:[%s5 + $0xbc] sm:$0xf]
    %v1527 = vld [vmem:[%s5 + $0xc0] sm:$0xf]
    %v1528 = vld [vmem:[%s5 + $0xc4] sm:$0xf]
    %v1529 = vld [vmem:[%s5 + $0xc8] sm:$0xf]
    %v1530 = vld [vmem:[%s5 + $0xcc] sm:$0xf]
    %v1531 = vld [vmem:[%s5 + $0xd0] sm:$0xf]
    %v1532 = vld [vmem:[%s5 + $0xd4] sm:$0xf]
    %v1533 = vld [vmem:[%s5 + $0xd8] sm:$0xf]
    %v1534 = vld [vmem:[%s5 + $0xdc] sm:$0xf]
    %v1535 = vrot.slane %v1216, 3
    %v1550 = vunpack.c.l.b16 %v1521
    %v1551 = vunpack.c.l.b16 %v1522
    %v1552 = vunpack.c.l.b16 %v1523
    %v1553 = vunpack.c.l.b16 %v1524
    %v1554 = vunpack.c.l.b16 %v1525
    %v1555 = vunpack.c.l.b16 %v1526
    %v1556 = vunpack.c.l.b16 %v1527
    %v1557 = vunpack.c.l.b16 %v1528
    %v1558 = vunpack.c.l.b16 %v1529
    %v1559 = vunpack.c.l.b16 %v1530
    %v1560 = vunpack.c.l.b16 %v1531
    %v1561 = vunpack.c.l.b16 %v1532
    %v1562 = vunpack.c.l.b16 %v1533
    %v1563 = vunpack.c.l.b16 %v1534
    %v1564 = vpack.c.b16 %v1551, %v1550
    %v1565 = vpack.c.b16 %v1553, %v1552
    %v1566 = vpack.c.b16 %v1555, %v1554
    %v1567 = vpack.c.b16 %v1557, %v1556
    %v1568 = vpack.c.b16 %v1559, %v1558
    %v1569 = vpack.c.b16 %v1561, %v1560
    %v1570 = vpack.c.b16 %v1563, %v1562
    %v1579 = vsel %vm1273, %v1535, 0
    %1581 = vmatprep.subr.bf16.mxu0 0
    %1582 = vmatpush1.bf16.msra.mxu0 0
    %1583 = vmatprep.subr.bf16.mxu0 0
    %1584 = vmatpush1.bf16.msra.mxu0 %v1570
    %1585 = vmatprep.subr.bf16.mxu0 0
    %1586 = vmatpush1.bf16.msra.mxu0 %v1569
    %1587 = vmatprep.subr.bf16.mxu0 0
    %1588 = vmatpush1.bf16.msra.mxu0 %v1568
    %1589 = vmatprep.subr.bf16.mxu0 0
    %1590 = vmatpush1.bf16.msra.mxu0 %v1567
    %1591 = vmatprep.subr.bf16.mxu0 0
    %1592 = vmatpush1.bf16.msra.mxu0 %v1566
    %1593 = vmatprep.subr.bf16.mxu0 0
    %1594 = vmatpush1.bf16.msra.mxu0 %v1565
    %1595 = vmatprep.subr.bf16.mxu0 0
    %1596 = vmatpush1.bf16.msra.mxu0 %v1564
    %1597 = vmatprep.subr.bf16.mxu0 0
    %1598 = vmatpush2.bf16.msra.mxu0 0
    %1599 = vmatprep.subr.bf16.mxu0 0
    %1600 = vmatpush2.bf16.msra.mxu0 0
    %1601 = vmatprep.subr.bf16.mxu0 0
    %1602 = vmatpush2.bf16.msra.mxu0 0
    %1603 = vmatprep.subr.bf16.mxu0 0
    %1604 = vmatpush2.bf16.msra.mxu0 0
    %1605 = vmatprep.subr.bf16.mxu0 0
    %1606 = vmatpush2.bf16.msra.mxu0 0
    %1607 = vmatprep.subr.bf16.mxu0 0
    %1608 = vmatpush2.bf16.msra.mxu0 0
    %1609 = vmatprep.subr.bf16.mxu0 0
    %1610 = vmatpush2.bf16.msra.mxu0 0
    %1611 = vmatprep.subr.bf16.mxu0 0
    %1612 = vmatpush2.bf16.msra.mxu0 0
    %1613 = vmatprep.mubr.bf16.mxu0 0
    %1614 = vmatmul.mubr.bf16.gmra.mxu0 %v1579
    %v1615 = vpop.f32.mrf.mxu0
    %v1616 = vadd.f32 0.0, %v1615
    %v1617 = vpop.f32.mrf.mxu0
    %v1618 = vpop.f32.mrf.mxu0
    %v1619 = vpop.f32.mrf.mxu0
    %1620 = vdwg.mxu0
    %v1621 = vadd.f32 %v1520, %v1616
    %v1622 = vmax.f32 %v1621, 0.0
    %v1623 = vld [vmem:[%s7] sm:$0x1]
    %v1624 = vmul.f32 %v1622, %v1623
    %vm1625 = vcmask 516096
    %v1626 = vsel %vm1625, %v1624, 0.0
    %1627 = vadd.xlane.f32.xlu0 %v1626
    %v1628 = vpop.xlane.xlu0 %1627
    %v1629 = vld [vmem:[#allocation2] sm:$0x1]
    %v1630 = vadd.f32 %v1628, %v1629
    %v1631 = vrcp.pop 6.2831855
    %v1632 = vmul.f32 %v1630, %v1631
    %v1633 = vadd.f32 %v1632, 0.5
    %v1634 = vfloor.f32 %v1633
    %v1635 = vmul.f32 %v1634, 6.2831855
    %v1636 = vsub.f32 %v1630, %v1635
    %vm1637 = vcmp.gt.f32.partialorder %v1636, 1.5707964
    %v1638 = vsub.f32 3.1415927, %v1636
    %v1639 = vsel %vm1637, %v1638, %v1636
    %vm1640 = vcmp.lt.f32.partialorder %v1639, -1.5707964
    %v1641 = vsub.f32 -3.1415927, %v1639
    %v1642 = vsel %vm1640, %v1641, %v1639
    %v1643 = vmul.f32 %v1642, %v1642
    %v1644 = vmul.f32 %v1643, 2.7557319e-06
    %v1645 = vadd.f32 %v1644, -0.0001984127
    %v1646 = vmul.f32 %v1643, %v1645
    %v1647 = vadd.f32 %v1646, 0.008333334
    %v1648 = vmul.f32 %v1643, %v1647
    %v1649 = vadd.f32 %v1648, -0.16666667
    %v1650 = vmul.f32 %v1643, %v1649
    %v1651 = vadd.f32 %v1650, 1.0
    %v1652 = vmul.f32 %v1642, %v1651
    %v1653 = vadd.f32 %v1652, 1.0
    %v1654 = vmul.f32 %v1653, 0.5
    %v1655 = vlaneseq
    %v1656 = vand.u32 %v1655, 127
    %vm1657 = vcmp.eq.s32.totalorder %v1656, 0
    %v1658 = vsub.f32 1.0, %v1654
    %1660 = vset.pattern.permute.xlu0 0
    %1661 = vperm.xlu0 %1660, %v1654
    %v1662 = vpop.permute.xlu0 %1661
    %1665 = vset.pattern.permute.xlu0 0
    %1666 = vperm.xlu0 %1665, %v1658
    %v1667 = vpop.permute.xlu0 %1666
    %v1669 = vsel %vm1657, %v1662, %v1667
    %vm1670 = vcmask 8192
    %1671 = vst.msk [vmem:[#allocation6] sm:$0x1] %vm1670, %v1669
    // Predicated region
    $region42: #{net_forward.1} parent=1 // pred_check
      _
    $region43: #{net_forward.1} parent=1 // pred_check_branch
      %1673 = sbr.rel (0) target = $region45
    $region44: #{net_forward.1} parent=1 // pred_region
      %s1675 = ssub.s32 16, 16
      %1676 = vsyncadd [#allocation5], %s1675
      %s1678 = sshll.u32 [#allocation6], 4
      %s1679 = int_to_ptr.vmem [resolvable:$true] %s1678
      %1681 = dma.vmem_to_hbm [thread:$0]  %s1679, 16, %s9, [#allocation5]
    $region45: #{net_forward.1} parent=1 // pred_fallthru
      _
    // Predicated region
    $region46: #{net_forward.1} parent=1 // pred_check
      _
    $region47: #{net_forward.1} parent=1 // pred_check_branch
      %1683 = sbr.rel (0) target = $region49
    $region48: #{net_forward.1} parent=1 // pred_region
      %1684 = dma.done [#allocation5], 16
    $region49: #{net_forward.1} parent=1 // pred_fallthru
      _
    %1685 = vsyncpa [#allocation4], 1
    %1686 = vsyncpa [#allocation5], 1

</llo_original>
